<compile_context>
chip_gen: v6e
topology: v6e:2x2x1
jax: 0.10.0
libtpu: 0.0.40
codegen_flags: <defaults>
</compile_context>

<pallas_src>
import functools

import jax
import jax.numpy as jnp
import numpy as np
from jax.experimental import pallas as pl
from jax.experimental.pallas import tpu as pltpu


LANE = 128            # pad output channels to a full lane group (unmasked stores)
SUBLANE = 8           # images per step aligned to sublanes (full (8,128) output tiles)
ROWS_PER_STEP = 2048  # target matmul rows per grid step (amortizes per-step overhead)


def _round_up(a, b):
    return (a + b - 1) // b * b


def _feature_kernel(p_ref, w_ref, b_ref, pool_ref, o_ref, *, inv_hw):
    # p_ref:    (TM, K)     bf16 im2col rows for this step's images (TM = imgs*HW)
    # w_ref:    (K, Cp)     bf16 conv weight, output channels zero-padded to 128 lanes
    # b_ref:    (1, Cp)     f32  conv bias (padded)
    # pool_ref: (imgs, TM)  bf16 0/1 per-image row selector (grid-invariant)
    # o_ref:    (imgs, Cp)  f32  pooled features for this step's images

    # conv-as-matmul on the MXU (bf16 x bf16, f32 accumulation)
    y = jnp.dot(p_ref[...], w_ref[...], preferred_element_type=jnp.float32)   # (TM, Cp)
    # bias + ReLU epilogue in f32 on the VPU
    y = jnp.maximum(y + b_ref[...], 0.0)
    # per-image segmented SUM as a bf16 MXU matmul (pool is a 0/1 selector); the
    # 1/HW mean scale is applied afterwards in f32 so any HW stays accurate.
    s = jnp.dot(pool_ref[...], y.astype(jnp.bfloat16),
                preferred_element_type=jnp.float32)                           # (imgs, Cp)
    o_ref[...] = s * inv_hw


def eval_model_features(x_nchw, w_conv, b_conv):
    """EvalModel features: mean_{H,W}(relu(conv3x3(x, padding=1))) -> (N, Chid).

    x_nchw: (N, Cin, H, W) f32 ; w_conv: (Chid, Cin, 3, 3) ; b_conv: (Chid,)
    """
    N, Cin, H, W = x_nchw.shape
    Chid = w_conv.shape[0]
    HW = H * W
    K = Cin * 9
    Cp = _round_up(max(Chid, LANE), LANE)        # lane-dense feature width

    # ---- step sizing: sublane-aligned image groups, ~ROWS_PER_STEP rows/step ----
    n_aligned = _round_up(N, SUBLANE)
    imgs_per_step = max(SUBLANE, (ROWS_PER_STEP // max(HW, 1)) // SUBLANE * SUBLANE)
    imgs_per_step = min(imgs_per_step, n_aligned)
    if n_aligned >= 2 * SUBLANE:
        # enough images for >=2 sublane-aligned steps: let the ("parallel",) grid
        # axis shard work across v7x's two TensorCores (neutral on v5e/v6e).
        imgs_per_step = min(imgs_per_step, _round_up(-(-n_aligned // 2), SUBLANE))
    num_steps = -(-n_aligned // imgs_per_step)
    n_pad = num_steps * imgs_per_step
    tm = imgs_per_step * HW

    # ---- glue (plain JAX): bf16 NHWC, pad, im2col with (kh, kw, cin) ordering ----
    x_nhwc = jnp.transpose(x_nchw, (0, 2, 3, 1)).astype(jnp.bfloat16)   # bf16 BEFORE im2col
    xp = jnp.pad(x_nhwc, ((0, 0), (1, 1), (1, 1), (0, 0)))              # conv padding=1
    cols = [xp[:, kh:kh + H, kw:kw + W, :] for kh in range(3) for kw in range(3)]
    patches = jnp.stack(cols, axis=3).reshape(N, HW, K)                 # (N, HW, K) bf16
    if n_pad != N:
        patches = jnp.pad(patches, ((0, n_pad - N), (0, 0), (0, 0)))
    patches = patches.reshape(n_pad * HW, K)

    # conv weight (Chid, Cin, 3, 3) -> (K, Cp) matching the (kh, kw, cin) patch order,
    # output channels zero-padded to 128 lanes so the kernel's store is unmasked.
    w_mat = jnp.transpose(w_conv, (2, 3, 1, 0)).reshape(K, Chid)
    w_mat = jnp.pad(w_mat, ((0, 0), (0, Cp - Chid))).astype(jnp.bfloat16)
    b_mat = jnp.pad(b_conv.reshape(1, Chid), ((0, 0), (0, Cp - Chid))).astype(jnp.float32)

    # grid-invariant 0/1 pooling selector, built once on the host (bf16-exact values).
    row_img = np.arange(tm, dtype=np.int64) // HW
    pool_np = (row_img[None, :] == np.arange(imgs_per_step, dtype=np.int64)[:, None])
    pool_mat = jnp.asarray(pool_np.astype(np.float32), dtype=jnp.bfloat16)   # (imgs, TM)

    kernel = functools.partial(_feature_kernel, inv_hw=float(1.0 / HW))
    feats = pl.pallas_call(
        kernel,
        out_shape=jax.ShapeDtypeStruct((n_pad, Cp), jnp.float32),
        grid_spec=pltpu.PrefetchScalarGridSpec(
            num_scalar_prefetch=0,
            grid=(num_steps,),
            in_specs=[
                pl.BlockSpec((tm, K), lambda i: (i, 0)),              # this step's patch rows
                pl.BlockSpec((K, Cp), lambda i: (0, 0)),              # weight: grid-invariant
                pl.BlockSpec((1, Cp), lambda i: (0, 0)),              # bias:   grid-invariant
                pl.BlockSpec((imgs_per_step, tm), lambda i: (0, 0)),  # pool:   grid-invariant
            ],
            out_specs=pl.BlockSpec((imgs_per_step, Cp), lambda i: (i, 0)),
        ),
        compiler_params=pltpu.CompilerParams(
            # multi-step grids (larger N) shard across v7x's two TensorCores; the
            # double-buffered tiles here are ~1 MiB, well under the scoped-VMEM default.
            dimension_semantics=("parallel",)),
    )(patches, w_mat, b_mat, pool_mat)

    return feats[:N, :Chid]                                            # drop lane/batch padding


def _reference_features(x_nchw, w_conv, b_conv):
    # pure-JAX f32 reference for the correctness check
    y = jax.lax.conv_general_dilated(
        x_nchw, w_conv, window_strides=(1, 1), padding="SAME",
        dimension_numbers=("NCHW", "OIHW", "NCHW"))
    y = y + b_conv.reshape(1, -1, 1, 1)
    y = jnp.maximum(y, 0.0)
    return jnp.mean(y, axis=(2, 3))                                    # (N, Chid)


if __name__ == "__main__":
    key = jax.random.PRNGKey(0)
    k_x, k_w, k_b = jax.random.split(key, 3)

    N, Cin, H, W = 2, 4, 16, 16
    Chid = 32

    x = jax.random.normal(k_x, (N, Cin, H, W), dtype=jnp.float32)
    w_conv = jax.random.normal(k_w, (Chid, Cin, 3, 3), dtype=jnp.float32) * 0.1
    b_conv = jax.random.normal(k_b, (Chid,), dtype=jnp.float32) * 0.1

    feats = jax.block_until_ready(eval_model_features(x, w_conv, b_conv))
    assert feats.shape == (N, Chid)

    # bf16 matmul inputs (f32 accumulate) -> slightly looser tolerance vs the f32 reference.
    ref = jax.block_until_ready(_reference_features(x, w_conv, b_conv))
    np.testing.assert_allclose(np.asarray(feats), np.asarray(ref), rtol=2e-2, atol=2e-2)

    print("KERNEL_OK")
</pallas_src>

<mosaic_0001>
module attributes {stable_mosaic.version = 11 : i64} {
  func.func @_feature_kernel(%arg0: i32, %arg1: memref<2048x36xbf16, #tpu.memory_space<vmem>>, %arg2: memref<36x128xbf16, #tpu.memory_space<vmem>>, %arg3: memref<1x128xf32, #tpu.memory_space<vmem>>, %arg4: memref<8x2048xbf16, #tpu.memory_space<vmem>>, %arg5: memref<8x128xf32, #tpu.memory_space<vmem>>) attributes {dimension_semantics = [#tpu.dimension_semantics<parallel>], iteration_bounds = array<i64: 1>, scalar_prefetch = 0 : i64, scratch_operands = 0 : i64, tpu.core_type = #tpu.core_type<tc>, window_params = [{transform_indices = @transform_0, window_bounds = array<i64: 2048, 36>}, {pipeline_mode = #tpu.pipeline_mode<synchronous>, transform_indices = @transform_1, window_bounds = array<i64: 36, 128>}, {pipeline_mode = #tpu.pipeline_mode<synchronous>, transform_indices = @transform_2, window_bounds = array<i64: 1, 128>}, {pipeline_mode = #tpu.pipeline_mode<synchronous>, transform_indices = @transform_3, window_bounds = array<i64: 8, 2048>}, {transform_indices = @transform_4, window_bounds = array<i64: 8, 128>}]} {
    %c0 = arith.constant 0 : index
    %c0_0 = arith.constant 0 : index
    %0 = vector.load %arg1[%c0, %c0_0] : memref<2048x36xbf16, #tpu.memory_space<vmem>>, vector<2048x36xbf16>
    %c0_1 = arith.constant 0 : index
    %c0_2 = arith.constant 0 : index
    %1 = vector.load %arg2[%c0_1, %c0_2] : memref<36x128xbf16, #tpu.memory_space<vmem>>, vector<36x128xbf16>
    %cst = arith.constant dense<0.000000e+00> : vector<2048x128xf32>
    %2 = tpu.matmul %0, %1, %cst {dimension_numbers = #tpu.dot_dimension_numbers<[1], [0], [0], [1], [0, 0, 1, 1], [], []>} : vector<2048x36xbf16>, vector<36x128xbf16>, vector<2048x128xf32> -> vector<2048x128xf32>
    %c0_3 = arith.constant 0 : index
    %c0_4 = arith.constant 0 : index
    %3 = vector.load %arg3[%c0_3, %c0_4] : memref<1x128xf32, #tpu.memory_space<vmem>>, vector<1x128xf32>
    %4 = vector.broadcast %3 : vector<1x128xf32> to vector<2048x128xf32>
    %5 = arith.addf %2, %4 : vector<2048x128xf32>
    %cst_5 = arith.constant 0.000000e+00 : f32
    %6 = vector.broadcast %cst_5 : f32 to vector<2048x128xf32>
    %7 = arith.maximumf %5, %6 : vector<2048x128xf32>
    %c0_6 = arith.constant 0 : index
    %c0_7 = arith.constant 0 : index
    %8 = vector.load %arg4[%c0_6, %c0_7] : memref<8x2048xbf16, #tpu.memory_space<vmem>>, vector<8x2048xbf16>
    %9 = arith.truncf %7 : vector<2048x128xf32> to vector<2048x128xbf16>
    %cst_8 = arith.constant dense<0.000000e+00> : vector<8x128xf32>
    %10 = tpu.matmul %8, %9, %cst_8 {dimension_numbers = #tpu.dot_dimension_numbers<[1], [0], [0], [1], [0, 0, 1, 1], [], []>} : vector<8x2048xbf16>, vector<2048x128xbf16>, vector<8x128xf32> -> vector<8x128xf32>
    %cst_9 = arith.constant 3.906250e-03 : f32
    %11 = vector.broadcast %cst_9 : f32 to vector<8x128xf32>
    %12 = arith.mulf %10, %11 : vector<8x128xf32>
    %c0_10 = arith.constant 0 : index
    %c0_11 = arith.constant 0 : index
    %13 = vector.load %arg5[%c0_10, %c0_11] : memref<8x128xf32, #tpu.memory_space<vmem>>, vector<8x128xf32>
    tpu.vector_store %arg5[%c0_10, %c0_11], %12 {strides = array<i32>} : memref<8x128xf32, #tpu.memory_space<vmem>>, vector<8x128xf32>,
    return
  }
  func.func @transform_0(%arg0: i32) -> (i32, i32) {
    %c0_i32 = arith.constant 0 : i32
    %c0_i32_0 = arith.constant 0 : i32
    return %arg0, %c0_i32 : i32, i32
  }
  func.func @transform_1(%arg0: i32) -> (i32, i32) {
    %c0_i32 = arith.constant 0 : i32
    %c0_i32_0 = arith.constant 0 : i32
    %c0_i32_1 = arith.constant 0 : i32
    return %c0_i32, %c0_i32_0 : i32, i32
  }
  func.func @transform_2(%arg0: i32) -> (i32, i32) {
    %c0_i32 = arith.constant 0 : i32
    %c0_i32_0 = arith.constant 0 : i32
    %c0_i32_1 = arith.constant 0 : i32
    return %c0_i32, %c0_i32_0 : i32, i32
  }
  func.func @transform_3(%arg0: i32) -> (i32, i32) {
    %c0_i32 = arith.constant 0 : i32
    %c0_i32_0 = arith.constant 0 : i32
    %c0_i32_1 = arith.constant 0 : i32
    return %c0_i32, %c0_i32_0 : i32, i32
  }
  func.func @transform_4(%arg0: i32) -> (i32, i32) {
    %c0_i32 = arith.constant 0 : i32
    %c0_i32_0 = arith.constant 0 : i32
    return %arg0, %c0_i32 : i32, i32
  }
}

</mosaic_0001>

<llo_original>
// kernel: tpu_custom_call.1
$region0: #{tpu_custom_call.1}
  #allocation0 [shape = 'u32[]', space=smem, size = 0x4, offset = 0x4, fixed_abs, tag = 'smem constant byte address 0x4 - core index']
  #allocation1 [shape = 'u32[144,128]{1,0:T(1,128)}', space=vmem, size = 0x12000, scoped, tag = 'internal scratch']
  %s0 = inlined_call_operand.vmem [shape: bf16[2048,36], index: 0, kind: input, shape index: {}]
  %s1 = inlined_call_operand.vmem [shape: bf16[36,128], index: 1, kind: input, shape index: {}]
  %s2 = inlined_call_operand.vmem [shape: f32[1,128], index: 2, kind: input, shape index: {}]
  %s3 = inlined_call_operand.vmem [shape: bf16[8,2048], index: 3, kind: input, shape index: {}]
  %s4 = inlined_call_operand.hbm [shape: f32[8,128], index: 4, kind: output, shape index: {}]
  %s5 = sld [smem:[#allocation0]]
  $region26: #{tpu_custom_call.1} parent=0
    _
  %s7 = ssub.s32 1, %s5
  %s8 = scalar_select 0, %s7, %s5
  $region1: #{tpu_custom_call.1} parent=0
    #allocation2 [shape = 'u8[4096]{0}', space=vmem, size = 0x1000, scoped, tag = 'output window, operand 0, single buffered']
    #allocation3 [shape = 's32[1]{0}', space=sflag, size = 0x4, scoped, tag = 'scoped memory for tpu_custom_call.1']
    %9 = vsyncpa [#allocation3], 0
    // Predicated region
    $region2: #{tpu_custom_call.1} parent=1 // pred_check
      _
    $region3: #{tpu_custom_call.1} parent=1 // pred_check_branch
      %11 = sbr.rel (0) target = $region5
    $region4: #{tpu_custom_call.1} parent=1 // pred_region
      _
    $region5: #{tpu_custom_call.1} parent=1 // pred_fallthru
      _
    // Predicated region
    $region6: #{tpu_custom_call.1} parent=1 // pred_check
      _
    $region7: #{tpu_custom_call.1} parent=1 // pred_check_branch
      %13 = sbr.rel (0) target = $region9
    $region8: #{tpu_custom_call.1} parent=1 // pred_region
      _
    $region9: #{tpu_custom_call.1} parent=1 // pred_fallthru
      _
    // Predicated region
    $region10: #{tpu_custom_call.1} parent=1 // pred_check
      _
    $region11: #{tpu_custom_call.1} parent=1 // pred_check_branch
      %15 = sbr.rel (0) target = $region13
    $region12: #{tpu_custom_call.1} parent=1 // pred_region
      _
    $region13: #{tpu_custom_call.1} parent=1 // pred_fallthru
      _
    // Predicated region
    $region14: #{tpu_custom_call.1} parent=1 // pred_check
      _
    $region15: #{tpu_custom_call.1} parent=1 // pred_check_branch
      %17 = sbr.rel (0) target = $region17
    $region16: #{tpu_custom_call.1} parent=1 // pred_region
      _
    $region17: #{tpu_custom_call.1} parent=1 // pred_fallthru
      _
    %v19 = vld [vmem:[%s0] sm:$0xf]
    %v20 = vld [vmem:[%s0 + $0x4] sm:$0xf]
    %v21 = vld [vmem:[%s0 + $0x8] sm:$0xf]
    %v22 = vld [vmem:[%s0 + $0xc] sm:$0xf]
    %v23 = vld [vmem:[%s0 + $0x10] sm:$0xf]
    %v24 = vld [vmem:[%s0 + $0x14] sm:$0xf]
    %v25 = vld [vmem:[%s0 + $0x18] sm:$0xf]
    %v26 = vld [vmem:[%s0 + $0x1c] sm:$0xf]
    %v27 = vld [vmem:[%s0 + $0x20] sm:$0xf]
    %v28 = vld [vmem:[%s0 + $0x24] sm:$0xf]
    %v29 = vld [vmem:[%s0 + $0x28] sm:$0xf]
    %v30 = vld [vmem:[%s0 + $0x2c] sm:$0xf]
    %v31 = vld [vmem:[%s0 + $0x30] sm:$0xf]
    %v32 = vld [vmem:[%s0 + $0x34] sm:$0xf]
    %v33 = vld [vmem:[%s0 + $0x38] sm:$0xf]
    %v34 = vld [vmem:[%s0 + $0x3c] sm:$0xf]
    %v35 = vld [vmem:[%s0 + $0x40] sm:$0xf]
    %v36 = vld [vmem:[%s0 + $0x44] sm:$0xf]
    %v37 = vld [vmem:[%s0 + $0x48] sm:$0xf]
    %v38 = vld [vmem:[%s0 + $0x4c] sm:$0xf]
    %v39 = vld [vmem:[%s0 + $0x50] sm:$0xf]
    %v40 = vld [vmem:[%s0 + $0x54] sm:$0xf]
    %v41 = vld [vmem:[%s0 + $0x58] sm:$0xf]
    %v42 = vld [vmem:[%s0 + $0x5c] sm:$0xf]
    %v43 = vld [vmem:[%s0 + $0x60] sm:$0xf]
    %v44 = vld [vmem:[%s0 + $0x64] sm:$0xf]
    %v45 = vld [vmem:[%s0 + $0x68] sm:$0xf]
    %v46 = vld [vmem:[%s0 + $0x6c] sm:$0xf]
    %v47 = vld [vmem:[%s0 + $0x70] sm:$0xf]
    %v48 = vld [vmem:[%s0 + $0x74] sm:$0xf]
    %v49 = vld [vmem:[%s0 + $0x78] sm:$0xf]
    %v50 = vld [vmem:[%s0 + $0x7c] sm:$0xf]
    %v51 = vld [vmem:[%s0 + $0x80] sm:$0xf]
    %v52 = vld [vmem:[%s0 + $0x84] sm:$0xf]
    %v53 = vld [vmem:[%s0 + $0x88] sm:$0xf]
    %v54 = vld [vmem:[%s0 + $0x8c] sm:$0xf]
    %v55 = vld [vmem:[%s0 + $0x90] sm:$0xf]
    %v56 = vld [vmem:[%s0 + $0x94] sm:$0xf]
    %v57 = vld [vmem:[%s0 + $0x98] sm:$0xf]
    %v58 = vld [vmem:[%s0 + $0x9c] sm:$0xf]
    %v59 = vld [vmem:[%s0 + $0xa0] sm:$0xf]
    %v60 = vld [vmem:[%s0 + $0xa4] sm:$0xf]
    %v61 = vld [vmem:[%s0 + $0xa8] sm:$0xf]
    %v62 = vld [vmem:[%s0 + $0xac] sm:$0xf]
    %v63 = vld [vmem:[%s0 + $0xb0] sm:$0xf]
    %v64 = vld [vmem:[%s0 + $0xb4] sm:$0xf]
    %v65 = vld [vmem:[%s0 + $0xb8] sm:$0xf]
    %v66 = vld [vmem:[%s0 + $0xbc] sm:$0xf]
    %v67 = vld [vmem:[%s0 + $0xc0] sm:$0xf]
    %v68 = vld [vmem:[%s0 + $0xc4] sm:$0xf]
    %v69 = vld [vmem:[%s0 + $0xc8] sm:$0xf]
    %v70 = vld [vmem:[%s0 + $0xcc] sm:$0xf]
    %v71 = vld [vmem:[%s0 + $0xd0] sm:$0xf]
    %v72 = vld [vmem:[%s0 + $0xd4] sm:$0xf]
    %v73 = vld [vmem:[%s0 + $0xd8] sm:$0xf]
    %v74 = vld [vmem:[%s0 + $0xdc] sm:$0xf]
    %v75 = vld [vmem:[%s0 + $0xe0] sm:$0xf]
    %v76 = vld [vmem:[%s0 + $0xe4] sm:$0xf]
    %v77 = vld [vmem:[%s0 + $0xe8] sm:$0xf]
    %v78 = vld [vmem:[%s0 + $0xec] sm:$0xf]
    %v79 = vld [vmem:[%s0 + $0xf0] sm:$0xf]
    %v80 = vld [vmem:[%s0 + $0xf4] sm:$0xf]
    %v81 = vld [vmem:[%s0 + $0xf8] sm:$0xf]
    %v82 = vld [vmem:[%s0 + $0xfc] sm:$0xf]
    %v83 = vld [vmem:[%s0 + $0x100] sm:$0xf]
    %v84 = vld [vmem:[%s0 + $0x104] sm:$0xf]
    %v85 = vld [vmem:[%s0 + $0x108] sm:$0xf]
    %v86 = vld [vmem:[%s0 + $0x10c] sm:$0xf]
    %v87 = vld [vmem:[%s0 + $0x110] sm:$0xf]
    %v88 = vld [vmem:[%s0 + $0x114] sm:$0xf]
    %v89 = vld [vmem:[%s0 + $0x118] sm:$0xf]
    %v90 = vld [vmem:[%s0 + $0x11c] sm:$0xf]
    %v91 = vld [vmem:[%s0 + $0x120] sm:$0xf]
    %v92 = vld [vmem:[%s0 + $0x124] sm:$0xf]
    %v93 = vld [vmem:[%s0 + $0x128] sm:$0xf]
    %v94 = vld [vmem:[%s0 + $0x12c] sm:$0xf]
    %v95 = vld [vmem:[%s0 + $0x130] sm:$0xf]
    %v96 = vld [vmem:[%s0 + $0x134] sm:$0xf]
    %v97 = vld [vmem:[%s0 + $0x138] sm:$0xf]
    %v98 = vld [vmem:[%s0 + $0x13c] sm:$0xf]
    %v99 = vld [vmem:[%s0 + $0x140] sm:$0xf]
    %v100 = vld [vmem:[%s0 + $0x144] sm:$0xf]
    %v101 = vld [vmem:[%s0 + $0x148] sm:$0xf]
    %v102 = vld [vmem:[%s0 + $0x14c] sm:$0xf]
    %v103 = vld [vmem:[%s0 + $0x150] sm:$0xf]
    %v104 = vld [vmem:[%s0 + $0x154] sm:$0xf]
    %v105 = vld [vmem:[%s0 + $0x158] sm:$0xf]
    %v106 = vld [vmem:[%s0 + $0x15c] sm:$0xf]
    %v107 = vld [vmem:[%s0 + $0x160] sm:$0xf]
    %v108 = vld [vmem:[%s0 + $0x164] sm:$0xf]
    %v109 = vld [vmem:[%s0 + $0x168] sm:$0xf]
    %v110 = vld [vmem:[%s0 + $0x16c] sm:$0xf]
    %v111 = vld [vmem:[%s0 + $0x170] sm:$0xf]
    %v112 = vld [vmem:[%s0 + $0x174] sm:$0xf]
    %v113 = vld [vmem:[%s0 + $0x178] sm:$0xf]
    %v114 = vld [vmem:[%s0 + $0x17c] sm:$0xf]
    %v115 = vld [vmem:[%s0 + $0x180] sm:$0xf]
    %v116 = vld [vmem:[%s0 + $0x184] sm:$0xf]
    %v117 = vld [vmem:[%s0 + $0x188] sm:$0xf]
    %v118 = vld [vmem:[%s0 + $0x18c] sm:$0xf]
    %v119 = vld [vmem:[%s0 + $0x190] sm:$0xf]
    %v120 = vld [vmem:[%s0 + $0x194] sm:$0xf]
    %v121 = vld [vmem:[%s0 + $0x198] sm:$0xf]
    %v122 = vld [vmem:[%s0 + $0x19c] sm:$0xf]
    %v123 = vld [vmem:[%s0 + $0x1a0] sm:$0xf]
    %v124 = vld [vmem:[%s0 + $0x1a4] sm:$0xf]
    %v125 = vld [vmem:[%s0 + $0x1a8] sm:$0xf]
    %v126 = vld [vmem:[%s0 + $0x1ac] sm:$0xf]
    %v127 = vld [vmem:[%s0 + $0x1b0] sm:$0xf]
    %v128 = vld [vmem:[%s0 + $0x1b4] sm:$0xf]
    %v129 = vld [vmem:[%s0 + $0x1b8] sm:$0xf]
    %v130 = vld [vmem:[%s0 + $0x1bc] sm:$0xf]
    %v131 = vld [vmem:[%s0 + $0x1c0] sm:$0xf]
    %v132 = vld [vmem:[%s0 + $0x1c4] sm:$0xf]
    %v133 = vld [vmem:[%s0 + $0x1c8] sm:$0xf]
    %v134 = vld [vmem:[%s0 + $0x1cc] sm:$0xf]
    %v135 = vld [vmem:[%s0 + $0x1d0] sm:$0xf]
    %v136 = vld [vmem:[%s0 + $0x1d4] sm:$0xf]
    %v137 = vld [vmem:[%s0 + $0x1d8] sm:$0xf]
    %v138 = vld [vmem:[%s0 + $0x1dc] sm:$0xf]
    %v139 = vld [vmem:[%s0 + $0x1e0] sm:$0xf]
    %v140 = vld [vmem:[%s0 + $0x1e4] sm:$0xf]
    %v141 = vld [vmem:[%s0 + $0x1e8] sm:$0xf]
    %v142 = vld [vmem:[%s0 + $0x1ec] sm:$0xf]
    %v143 = vld [vmem:[%s0 + $0x1f0] sm:$0xf]
    %v144 = vld [vmem:[%s0 + $0x1f4] sm:$0xf]
    %v145 = vld [vmem:[%s0 + $0x1f8] sm:$0xf]
    %v146 = vld [vmem:[%s0 + $0x1fc] sm:$0xf]
    %v147 = vld [vmem:[%s0 + $0x200] sm:$0xf]
    %v148 = vld [vmem:[%s0 + $0x204] sm:$0xf]
    %v149 = vld [vmem:[%s0 + $0x208] sm:$0xf]
    %v150 = vld [vmem:[%s0 + $0x20c] sm:$0xf]
    %v151 = vld [vmem:[%s0 + $0x210] sm:$0xf]
    %v152 = vld [vmem:[%s0 + $0x214] sm:$0xf]
    %v153 = vld [vmem:[%s0 + $0x218] sm:$0xf]
    %v154 = vld [vmem:[%s0 + $0x21c] sm:$0xf]
    %v155 = vld [vmem:[%s0 + $0x220] sm:$0xf]
    %v156 = vld [vmem:[%s0 + $0x224] sm:$0xf]
    %v157 = vld [vmem:[%s0 + $0x228] sm:$0xf]
    %v158 = vld [vmem:[%s0 + $0x22c] sm:$0xf]
    %v159 = vld [vmem:[%s0 + $0x230] sm:$0xf]
    %v160 = vld [vmem:[%s0 + $0x234] sm:$0xf]
    %v161 = vld [vmem:[%s0 + $0x238] sm:$0xf]
    %v162 = vld [vmem:[%s0 + $0x23c] sm:$0xf]
    %v163 = vld [vmem:[%s0 + $0x240] sm:$0xf]
    %v164 = vld [vmem:[%s0 + $0x244] sm:$0xf]
    %v165 = vld [vmem:[%s0 + $0x248] sm:$0xf]
    %v166 = vld [vmem:[%s0 + $0x24c] sm:$0xf]
    %v167 = vld [vmem:[%s0 + $0x250] sm:$0xf]
    %v168 = vld [vmem:[%s0 + $0x254] sm:$0xf]
    %v169 = vld [vmem:[%s0 + $0x258] sm:$0xf]
    %v170 = vld [vmem:[%s0 + $0x25c] sm:$0xf]
    %v171 = vld [vmem:[%s0 + $0x260] sm:$0xf]
    %v172 = vld [vmem:[%s0 + $0x264] sm:$0xf]
    %v173 = vld [vmem:[%s0 + $0x268] sm:$0xf]
    %v174 = vld [vmem:[%s0 + $0x26c] sm:$0xf]
    %v175 = vld [vmem:[%s0 + $0x270] sm:$0xf]
    %v176 = vld [vmem:[%s0 + $0x274] sm:$0xf]
    %v177 = vld [vmem:[%s0 + $0x278] sm:$0xf]
    %v178 = vld [vmem:[%s0 + $0x27c] sm:$0xf]
    %v179 = vld [vmem:[%s0 + $0x280] sm:$0xf]
    %v180 = vld [vmem:[%s0 + $0x284] sm:$0xf]
    %v181 = vld [vmem:[%s0 + $0x288] sm:$0xf]
    %v182 = vld [vmem:[%s0 + $0x28c] sm:$0xf]
    %v183 = vld [vmem:[%s0 + $0x290] sm:$0xf]
    %v184 = vld [vmem:[%s0 + $0x294] sm:$0xf]
    %v185 = vld [vmem:[%s0 + $0x298] sm:$0xf]
    %v186 = vld [vmem:[%s0 + $0x29c] sm:$0xf]
    %v187 = vld [vmem:[%s0 + $0x2a0] sm:$0xf]
    %v188 = vld [vmem:[%s0 + $0x2a4] sm:$0xf]
    %v189 = vld [vmem:[%s0 + $0x2a8] sm:$0xf]
    %v190 = vld [vmem:[%s0 + $0x2ac] sm:$0xf]
    %v191 = vld [vmem:[%s0 + $0x2b0] sm:$0xf]
    %v192 = vld [vmem:[%s0 + $0x2b4] sm:$0xf]
    %v193 = vld [vmem:[%s0 + $0x2b8] sm:$0xf]
    %v194 = vld [vmem:[%s0 + $0x2bc] sm:$0xf]
    %v195 = vld [vmem:[%s0 + $0x2c0] sm:$0xf]
    %v196 = vld [vmem:[%s0 + $0x2c4] sm:$0xf]
    %v197 = vld [vmem:[%s0 + $0x2c8] sm:$0xf]
    %v198 = vld [vmem:[%s0 + $0x2cc] sm:$0xf]
    %v199 = vld [vmem:[%s0 + $0x2d0] sm:$0xf]
    %v200 = vld [vmem:[%s0 + $0x2d4] sm:$0xf]
    %v201 = vld [vmem:[%s0 + $0x2d8] sm:$0xf]
    %v202 = vld [vmem:[%s0 + $0x2dc] sm:$0xf]
    %v203 = vld [vmem:[%s0 + $0x2e0] sm:$0xf]
    %v204 = vld [vmem:[%s0 + $0x2e4] sm:$0xf]
    %v205 = vld [vmem:[%s0 + $0x2e8] sm:$0xf]
    %v206 = vld [vmem:[%s0 + $0x2ec] sm:$0xf]
    %v207 = vld [vmem:[%s0 + $0x2f0] sm:$0xf]
    %v208 = vld [vmem:[%s0 + $0x2f4] sm:$0xf]
    %v209 = vld [vmem:[%s0 + $0x2f8] sm:$0xf]
    %v210 = vld [vmem:[%s0 + $0x2fc] sm:$0xf]
    %v211 = vld [vmem:[%s0 + $0x300] sm:$0xf]
    %v212 = vld [vmem:[%s0 + $0x304] sm:$0xf]
    %v213 = vld [vmem:[%s0 + $0x308] sm:$0xf]
    %v214 = vld [vmem:[%s0 + $0x30c] sm:$0xf]
    %v215 = vld [vmem:[%s0 + $0x310] sm:$0xf]
    %v216 = vld [vmem:[%s0 + $0x314] sm:$0xf]
    %v217 = vld [vmem:[%s0 + $0x318] sm:$0xf]
    %v218 = vld [vmem:[%s0 + $0x31c] sm:$0xf]
    %v219 = vld [vmem:[%s0 + $0x320] sm:$0xf]
    %v220 = vld [vmem:[%s0 + $0x324] sm:$0xf]
    %v221 = vld [vmem:[%s0 + $0x328] sm:$0xf]
    %v222 = vld [vmem:[%s0 + $0x32c] sm:$0xf]
    %v223 = vld [vmem:[%s0 + $0x330] sm:$0xf]
    %v224 = vld [vmem:[%s0 + $0x334] sm:$0xf]
    %v225 = vld [vmem:[%s0 + $0x338] sm:$0xf]
    %v226 = vld [vmem:[%s0 + $0x33c] sm:$0xf]
    %v227 = vld [vmem:[%s0 + $0x340] sm:$0xf]
    %v228 = vld [vmem:[%s0 + $0x344] sm:$0xf]
    %v229 = vld [vmem:[%s0 + $0x348] sm:$0xf]
    %v230 = vld [vmem:[%s0 + $0x34c] sm:$0xf]
    %v231 = vld [vmem:[%s0 + $0x350] sm:$0xf]
    %v232 = vld [vmem:[%s0 + $0x354] sm:$0xf]
    %v233 = vld [vmem:[%s0 + $0x358] sm:$0xf]
    %v234 = vld [vmem:[%s0 + $0x35c] sm:$0xf]
    %v235 = vld [vmem:[%s0 + $0x360] sm:$0xf]
    %v236 = vld [vmem:[%s0 + $0x364] sm:$0xf]
    %v237 = vld [vmem:[%s0 + $0x368] sm:$0xf]
    %v238 = vld [vmem:[%s0 + $0x36c] sm:$0xf]
    %v239 = vld [vmem:[%s0 + $0x370] sm:$0xf]
    %v240 = vld [vmem:[%s0 + $0x374] sm:$0xf]
    %v241 = vld [vmem:[%s0 + $0x378] sm:$0xf]
    %v242 = vld [vmem:[%s0 + $0x37c] sm:$0xf]
    %v243 = vld [vmem:[%s0 + $0x380] sm:$0xf]
    %v244 = vld [vmem:[%s0 + $0x384] sm:$0xf]
    %v245 = vld [vmem:[%s0 + $0x388] sm:$0xf]
    %v246 = vld [vmem:[%s0 + $0x38c] sm:$0xf]
    %v247 = vld [vmem:[%s0 + $0x390] sm:$0xf]
    %v248 = vld [vmem:[%s0 + $0x394] sm:$0xf]
    %v249 = vld [vmem:[%s0 + $0x398] sm:$0xf]
    %v250 = vld [vmem:[%s0 + $0x39c] sm:$0xf]
    %v251 = vld [vmem:[%s0 + $0x3a0] sm:$0xf]
    %v252 = vld [vmem:[%s0 + $0x3a4] sm:$0xf]
    %v253 = vld [vmem:[%s0 + $0x3a8] sm:$0xf]
    %v254 = vld [vmem:[%s0 + $0x3ac] sm:$0xf]
    %v255 = vld [vmem:[%s0 + $0x3b0] sm:$0xf]
    %v256 = vld [vmem:[%s0 + $0x3b4] sm:$0xf]
    %v257 = vld [vmem:[%s0 + $0x3b8] sm:$0xf]
    %v258 = vld [vmem:[%s0 + $0x3bc] sm:$0xf]
    %v259 = vld [vmem:[%s0 + $0x3c0] sm:$0xf]
    %v260 = vld [vmem:[%s0 + $0x3c4] sm:$0xf]
    %v261 = vld [vmem:[%s0 + $0x3c8] sm:$0xf]
    %v262 = vld [vmem:[%s0 + $0x3cc] sm:$0xf]
    %v263 = vld [vmem:[%s0 + $0x3d0] sm:$0xf]
    %v264 = vld [vmem:[%s0 + $0x3d4] sm:$0xf]
    %v265 = vld [vmem:[%s0 + $0x3d8] sm:$0xf]
    %v266 = vld [vmem:[%s0 + $0x3dc] sm:$0xf]
    %v267 = vld [vmem:[%s0 + $0x3e0] sm:$0xf]
    %v268 = vld [vmem:[%s0 + $0x3e4] sm:$0xf]
    %v269 = vld [vmem:[%s0 + $0x3e8] sm:$0xf]
    %v270 = vld [vmem:[%s0 + $0x3ec] sm:$0xf]
    %v271 = vld [vmem:[%s0 + $0x3f0] sm:$0xf]
    %v272 = vld [vmem:[%s0 + $0x3f4] sm:$0xf]
    %v273 = vld [vmem:[%s0 + $0x3f8] sm:$0xf]
    %v274 = vld [vmem:[%s0 + $0x3fc] sm:$0xf]
    %v275 = vld [vmem:[%s1] sm:$0xf]
    %v276 = vld [vmem:[%s1 + $0x4] sm:$0xf]
    %v277 = vld [vmem:[%s1 + $0x8] sm:$0xf]
    %v278 = vld [vmem:[%s1 + $0xc] sm:$0xf]
    %v279 = vld [vmem:[%s1 + $0x10] sm:$0x3]
    %v280 = vld [vmem:[%s2] sm:$0x1]
    %v282 = vlaneseq
    %v283 = vshrl.u32 %v282, 7
    %v284 = vsub.s32 0, %v283
    %v285 = vrot.slane %v280, %v284
    %v543 = vunpack.c.l.b16 %v19
    %v544 = vunpack.c.l.b16 %v20
    %v545 = vunpack.c.l.b16 %v21
    %v546 = vunpack.c.l.b16 %v22
    %v547 = vunpack.c.l.b16 %v23
    %v548 = vunpack.c.l.b16 %v24
    %v549 = vunpack.c.l.b16 %v25
    %v550 = vunpack.c.l.b16 %v26
    %v551 = vunpack.c.l.b16 %v27
    %v552 = vunpack.c.l.b16 %v28
    %v553 = vunpack.c.l.b16 %v29
    %v554 = vunpack.c.l.b16 %v30
    %v555 = vunpack.c.l.b16 %v31
    %v556 = vunpack.c.l.b16 %v32
    %v557 = vunpack.c.l.b16 %v33
    %v558 = vunpack.c.l.b16 %v34
    %v559 = vunpack.c.l.b16 %v35
    %v560 = vunpack.c.l.b16 %v36
    %v561 = vunpack.c.l.b16 %v37
    %v562 = vunpack.c.l.b16 %v38
    %v563 = vunpack.c.l.b16 %v39
    %v564 = vunpack.c.l.b16 %v40
    %v565 = vunpack.c.l.b16 %v41
    %v566 = vunpack.c.l.b16 %v42
    %v567 = vunpack.c.l.b16 %v43
    %v568 = vunpack.c.l.b16 %v44
    %v569 = vunpack.c.l.b16 %v45
    %v570 = vunpack.c.l.b16 %v46
    %v571 = vunpack.c.l.b16 %v47
    %v572 = vunpack.c.l.b16 %v48
    %v573 = vunpack.c.l.b16 %v49
    %v574 = vunpack.c.l.b16 %v50
    %v575 = vunpack.c.l.b16 %v51
    %v576 = vunpack.c.l.b16 %v52
    %v577 = vunpack.c.l.b16 %v53
    %v578 = vunpack.c.l.b16 %v54
    %v579 = vunpack.c.l.b16 %v55
    %v580 = vunpack.c.l.b16 %v56
    %v581 = vunpack.c.l.b16 %v57
    %v582 = vunpack.c.l.b16 %v58
    %v583 = vunpack.c.l.b16 %v59
    %v584 = vunpack.c.l.b16 %v60
    %v585 = vunpack.c.l.b16 %v61
    %v586 = vunpack.c.l.b16 %v62
    %v587 = vunpack.c.l.b16 %v63
    %v588 = vunpack.c.l.b16 %v64
    %v589 = vunpack.c.l.b16 %v65
    %v590 = vunpack.c.l.b16 %v66
    %v591 = vunpack.c.l.b16 %v67
    %v592 = vunpack.c.l.b16 %v68
    %v593 = vunpack.c.l.b16 %v69
    %v594 = vunpack.c.l.b16 %v70
    %v595 = vunpack.c.l.b16 %v71
    %v596 = vunpack.c.l.b16 %v72
    %v597 = vunpack.c.l.b16 %v73
    %v598 = vunpack.c.l.b16 %v74
    %v599 = vunpack.c.l.b16 %v75
    %v600 = vunpack.c.l.b16 %v76
    %v601 = vunpack.c.l.b16 %v77
    %v602 = vunpack.c.l.b16 %v78
    %v603 = vunpack.c.l.b16 %v79
    %v604 = vunpack.c.l.b16 %v80
    %v605 = vunpack.c.l.b16 %v81
    %v606 = vunpack.c.l.b16 %v82
    %v607 = vunpack.c.l.b16 %v83
    %v608 = vunpack.c.l.b16 %v84
    %v609 = vunpack.c.l.b16 %v85
    %v610 = vunpack.c.l.b16 %v86
    %v611 = vunpack.c.l.b16 %v87
    %v612 = vunpack.c.l.b16 %v88
    %v613 = vunpack.c.l.b16 %v89
    %v614 = vunpack.c.l.b16 %v90
    %v615 = vunpack.c.l.b16 %v91
    %v616 = vunpack.c.l.b16 %v92
    %v617 = vunpack.c.l.b16 %v93
    %v618 = vunpack.c.l.b16 %v94
    %v619 = vunpack.c.l.b16 %v95
    %v620 = vunpack.c.l.b16 %v96
    %v621 = vunpack.c.l.b16 %v97
    %v622 = vunpack.c.l.b16 %v98
    %v623 = vunpack.c.l.b16 %v99
    %v624 = vunpack.c.l.b16 %v100
    %v625 = vunpack.c.l.b16 %v101
    %v626 = vunpack.c.l.b16 %v102
    %v627 = vunpack.c.l.b16 %v103
    %v628 = vunpack.c.l.b16 %v104
    %v629 = vunpack.c.l.b16 %v105
    %v630 = vunpack.c.l.b16 %v106
    %v631 = vunpack.c.l.b16 %v107
    %v632 = vunpack.c.l.b16 %v108
    %v633 = vunpack.c.l.b16 %v109
    %v634 = vunpack.c.l.b16 %v110
    %v635 = vunpack.c.l.b16 %v111
    %v636 = vunpack.c.l.b16 %v112
    %v637 = vunpack.c.l.b16 %v113
    %v638 = vunpack.c.l.b16 %v114
    %v639 = vunpack.c.l.b16 %v115
    %v640 = vunpack.c.l.b16 %v116
    %v641 = vunpack.c.l.b16 %v117
    %v642 = vunpack.c.l.b16 %v118
    %v643 = vunpack.c.l.b16 %v119
    %v644 = vunpack.c.l.b16 %v120
    %v645 = vunpack.c.l.b16 %v121
    %v646 = vunpack.c.l.b16 %v122
    %v647 = vunpack.c.l.b16 %v123
    %v648 = vunpack.c.l.b16 %v124
    %v649 = vunpack.c.l.b16 %v125
    %v650 = vunpack.c.l.b16 %v126
    %v651 = vunpack.c.l.b16 %v127
    %v652 = vunpack.c.l.b16 %v128
    %v653 = vunpack.c.l.b16 %v129
    %v654 = vunpack.c.l.b16 %v130
    %v655 = vunpack.c.l.b16 %v131
    %v656 = vunpack.c.l.b16 %v132
    %v657 = vunpack.c.l.b16 %v133
    %v658 = vunpack.c.l.b16 %v134
    %v659 = vunpack.c.l.b16 %v135
    %v660 = vunpack.c.l.b16 %v136
    %v661 = vunpack.c.l.b16 %v137
    %v662 = vunpack.c.l.b16 %v138
    %v663 = vunpack.c.l.b16 %v139
    %v664 = vunpack.c.l.b16 %v140
    %v665 = vunpack.c.l.b16 %v141
    %v666 = vunpack.c.l.b16 %v142
    %v667 = vunpack.c.l.b16 %v143
    %v668 = vunpack.c.l.b16 %v144
    %v669 = vunpack.c.l.b16 %v145
    %v670 = vunpack.c.l.b16 %v146
    %v671 = vunpack.c.l.b16 %v147
    %v672 = vunpack.c.l.b16 %v148
    %v673 = vunpack.c.l.b16 %v149
    %v674 = vunpack.c.l.b16 %v150
    %v675 = vunpack.c.l.b16 %v151
    %v676 = vunpack.c.l.b16 %v152
    %v677 = vunpack.c.l.b16 %v153
    %v678 = vunpack.c.l.b16 %v154
    %v679 = vunpack.c.l.b16 %v155
    %v680 = vunpack.c.l.b16 %v156
    %v681 = vunpack.c.l.b16 %v157
    %v682 = vunpack.c.l.b16 %v158
    %v683 = vunpack.c.l.b16 %v159
    %v684 = vunpack.c.l.b16 %v160
    %v685 = vunpack.c.l.b16 %v161
    %v686 = vunpack.c.l.b16 %v162
    %v687 = vunpack.c.l.b16 %v163
    %v688 = vunpack.c.l.b16 %v164
    %v689 = vunpack.c.l.b16 %v165
    %v690 = vunpack.c.l.b16 %v166
    %v691 = vunpack.c.l.b16 %v167
    %v692 = vunpack.c.l.b16 %v168
    %v693 = vunpack.c.l.b16 %v169
    %v694 = vunpack.c.l.b16 %v170
    %v695 = vunpack.c.l.b16 %v171
    %v696 = vunpack.c.l.b16 %v172
    %v697 = vunpack.c.l.b16 %v173
    %v698 = vunpack.c.l.b16 %v174
    %v699 = vunpack.c.l.b16 %v175
    %v700 = vunpack.c.l.b16 %v176
    %v701 = vunpack.c.l.b16 %v177
    %v702 = vunpack.c.l.b16 %v178
    %v703 = vunpack.c.l.b16 %v179
    %v704 = vunpack.c.l.b16 %v180
    %v705 = vunpack.c.l.b16 %v181
    %v706 = vunpack.c.l.b16 %v182
    %v707 = vunpack.c.l.b16 %v183
    %v708 = vunpack.c.l.b16 %v184
    %v709 = vunpack.c.l.b16 %v185
    %v710 = vunpack.c.l.b16 %v186
    %v711 = vunpack.c.l.b16 %v187
    %v712 = vunpack.c.l.b16 %v188
    %v713 = vunpack.c.l.b16 %v189
    %v714 = vunpack.c.l.b16 %v190
    %v715 = vunpack.c.l.b16 %v191
    %v716 = vunpack.c.l.b16 %v192
    %v717 = vunpack.c.l.b16 %v193
    %v718 = vunpack.c.l.b16 %v194
    %v719 = vunpack.c.l.b16 %v195
    %v720 = vunpack.c.l.b16 %v196
    %v721 = vunpack.c.l.b16 %v197
    %v722 = vunpack.c.l.b16 %v198
    %v723 = vunpack.c.l.b16 %v199
    %v724 = vunpack.c.l.b16 %v200
    %v725 = vunpack.c.l.b16 %v201
    %v726 = vunpack.c.l.b16 %v202
    %v727 = vunpack.c.l.b16 %v203
    %v728 = vunpack.c.l.b16 %v204
    %v729 = vunpack.c.l.b16 %v205
    %v730 = vunpack.c.l.b16 %v206
    %v731 = vunpack.c.l.b16 %v207
    %v732 = vunpack.c.l.b16 %v208
    %v733 = vunpack.c.l.b16 %v209
    %v734 = vunpack.c.l.b16 %v210
    %v735 = vunpack.c.l.b16 %v211
    %v736 = vunpack.c.l.b16 %v212
    %v737 = vunpack.c.l.b16 %v213
    %v738 = vunpack.c.l.b16 %v214
    %v739 = vunpack.c.l.b16 %v215
    %v740 = vunpack.c.l.b16 %v216
    %v741 = vunpack.c.l.b16 %v217
    %v742 = vunpack.c.l.b16 %v218
    %v743 = vunpack.c.l.b16 %v219
    %v744 = vunpack.c.l.b16 %v220
    %v745 = vunpack.c.l.b16 %v221
    %v746 = vunpack.c.l.b16 %v222
    %v747 = vunpack.c.l.b16 %v223
    %v748 = vunpack.c.l.b16 %v224
    %v749 = vunpack.c.l.b16 %v225
    %v750 = vunpack.c.l.b16 %v226
    %v751 = vunpack.c.l.b16 %v227
    %v752 = vunpack.c.l.b16 %v228
    %v753 = vunpack.c.l.b16 %v229
    %v754 = vunpack.c.l.b16 %v230
    %v755 = vunpack.c.l.b16 %v231
    %v756 = vunpack.c.l.b16 %v232
    %v757 = vunpack.c.l.b16 %v233
    %v758 = vunpack.c.l.b16 %v234
    %v759 = vunpack.c.l.b16 %v235
    %v760 = vunpack.c.l.b16 %v236
    %v761 = vunpack.c.l.b16 %v237
    %v762 = vunpack.c.l.b16 %v238
    %v763 = vunpack.c.l.b16 %v239
    %v764 = vunpack.c.l.b16 %v240
    %v765 = vunpack.c.l.b16 %v241
    %v766 = vunpack.c.l.b16 %v242
    %v767 = vunpack.c.l.b16 %v243
    %v768 = vunpack.c.l.b16 %v244
    %v769 = vunpack.c.l.b16 %v245
    %v770 = vunpack.c.l.b16 %v246
    %v771 = vunpack.c.l.b16 %v247
    %v772 = vunpack.c.l.b16 %v248
    %v773 = vunpack.c.l.b16 %v249
    %v774 = vunpack.c.l.b16 %v250
    %v775 = vunpack.c.l.b16 %v251
    %v776 = vunpack.c.l.b16 %v252
    %v777 = vunpack.c.l.b16 %v253
    %v778 = vunpack.c.l.b16 %v254
    %v779 = vunpack.c.l.b16 %v255
    %v780 = vunpack.c.l.b16 %v256
    %v781 = vunpack.c.l.b16 %v257
    %v782 = vunpack.c.l.b16 %v258
    %v783 = vunpack.c.l.b16 %v259
    %v784 = vunpack.c.l.b16 %v260
    %v785 = vunpack.c.l.b16 %v261
    %v786 = vunpack.c.l.b16 %v262
    %v787 = vunpack.c.l.b16 %v263
    %v788 = vunpack.c.l.b16 %v264
    %v789 = vunpack.c.l.b16 %v265
    %v790 = vunpack.c.l.b16 %v266
    %v791 = vunpack.c.l.b16 %v267
    %v792 = vunpack.c.l.b16 %v268
    %v793 = vunpack.c.l.b16 %v269
    %v794 = vunpack.c.l.b16 %v270
    %v795 = vunpack.c.l.b16 %v271
    %v796 = vunpack.c.l.b16 %v272
    %v797 = vunpack.c.l.b16 %v273
    %v798 = vunpack.c.l.b16 %v274
    %v799 = vpack.c.b16 %v544, %v543
    %v800 = vpack.c.b16 %v546, %v545
    %v801 = vpack.c.b16 %v548, %v547
    %v802 = vpack.c.b16 %v550, %v549
    %v803 = vpack.c.b16 %v552, %v551
    %v804 = vpack.c.b16 %v554, %v553
    %v805 = vpack.c.b16 %v556, %v555
    %v806 = vpack.c.b16 %v558, %v557
    %v807 = vpack.c.b16 %v560, %v559
    %v808 = vpack.c.b16 %v562, %v561
    %v809 = vpack.c.b16 %v564, %v563
    %v810 = vpack.c.b16 %v566, %v565
    %v811 = vpack.c.b16 %v568, %v567
    %v812 = vpack.c.b16 %v570, %v569
    %v813 = vpack.c.b16 %v572, %v571
    %v814 = vpack.c.b16 %v574, %v573
    %v815 = vpack.c.b16 %v576, %v575
    %v816 = vpack.c.b16 %v578, %v577
    %v817 = vpack.c.b16 %v580, %v579
    %v818 = vpack.c.b16 %v582, %v581
    %v819 = vpack.c.b16 %v584, %v583
    %v820 = vpack.c.b16 %v586, %v585
    %v821 = vpack.c.b16 %v588, %v587
    %v822 = vpack.c.b16 %v590, %v589
    %v823 = vpack.c.b16 %v592, %v591
    %v824 = vpack.c.b16 %v594, %v593
    %v825 = vpack.c.b16 %v596, %v595
    %v826 = vpack.c.b16 %v598, %v597
    %v827 = vpack.c.b16 %v600, %v599
    %v828 = vpack.c.b16 %v602, %v601
    %v829 = vpack.c.b16 %v604, %v603
    %v830 = vpack.c.b16 %v606, %v605
    %v831 = vpack.c.b16 %v608, %v607
    %v832 = vpack.c.b16 %v610, %v609
    %v833 = vpack.c.b16 %v612, %v611
    %v834 = vpack.c.b16 %v614, %v613
    %v835 = vpack.c.b16 %v616, %v615
    %v836 = vpack.c.b16 %v618, %v617
    %v837 = vpack.c.b16 %v620, %v619
    %v838 = vpack.c.b16 %v622, %v621
    %v839 = vpack.c.b16 %v624, %v623
    %v840 = vpack.c.b16 %v626, %v625
    %v841 = vpack.c.b16 %v628, %v627
    %v842 = vpack.c.b16 %v630, %v629
    %v843 = vpack.c.b16 %v632, %v631
    %v844 = vpack.c.b16 %v634, %v633
    %v845 = vpack.c.b16 %v636, %v635
    %v846 = vpack.c.b16 %v638, %v637
    %v847 = vpack.c.b16 %v640, %v639
    %v848 = vpack.c.b16 %v642, %v641
    %v849 = vpack.c.b16 %v644, %v643
    %v850 = vpack.c.b16 %v646, %v645
    %v851 = vpack.c.b16 %v648, %v647
    %v852 = vpack.c.b16 %v650, %v649
    %v853 = vpack.c.b16 %v652, %v651
    %v854 = vpack.c.b16 %v654, %v653
    %v855 = vpack.c.b16 %v656, %v655
    %v856 = vpack.c.b16 %v658, %v657
    %v857 = vpack.c.b16 %v660, %v659
    %v858 = vpack.c.b16 %v662, %v661
    %v859 = vpack.c.b16 %v664, %v663
    %v860 = vpack.c.b16 %v666, %v665
    %v861 = vpack.c.b16 %v668, %v667
    %v862 = vpack.c.b16 %v670, %v669
    %v863 = vpack.c.b16 %v672, %v671
    %v864 = vpack.c.b16 %v674, %v673
    %v865 = vpack.c.b16 %v676, %v675
    %v866 = vpack.c.b16 %v678, %v677
    %v867 = vpack.c.b16 %v680, %v679
    %v868 = vpack.c.b16 %v682, %v681
    %v869 = vpack.c.b16 %v684, %v683
    %v870 = vpack.c.b16 %v686, %v685
    %v871 = vpack.c.b16 %v688, %v687
    %v872 = vpack.c.b16 %v690, %v689
    %v873 = vpack.c.b16 %v692, %v691
    %v874 = vpack.c.b16 %v694, %v693
    %v875 = vpack.c.b16 %v696, %v695
    %v876 = vpack.c.b16 %v698, %v697
    %v877 = vpack.c.b16 %v700, %v699
    %v878 = vpack.c.b16 %v702, %v701
    %v879 = vpack.c.b16 %v704, %v703
    %v880 = vpack.c.b16 %v706, %v705
    %v881 = vpack.c.b16 %v708, %v707
    %v882 = vpack.c.b16 %v710, %v709
    %v883 = vpack.c.b16 %v712, %v711
    %v884 = vpack.c.b16 %v714, %v713
    %v885 = vpack.c.b16 %v716, %v715
    %v886 = vpack.c.b16 %v718, %v717
    %v887 = vpack.c.b16 %v720, %v719
    %v888 = vpack.c.b16 %v722, %v721
    %v889 = vpack.c.b16 %v724, %v723
    %v890 = vpack.c.b16 %v726, %v725
    %v891 = vpack.c.b16 %v728, %v727
    %v892 = vpack.c.b16 %v730, %v729
    %v893 = vpack.c.b16 %v732, %v731
    %v894 = vpack.c.b16 %v734, %v733
    %v895 = vpack.c.b16 %v736, %v735
    %v896 = vpack.c.b16 %v738, %v737
    %v897 = vpack.c.b16 %v740, %v739
    %v898 = vpack.c.b16 %v742, %v741
    %v899 = vpack.c.b16 %v744, %v743
    %v900 = vpack.c.b16 %v746, %v745
    %v901 = vpack.c.b16 %v748, %v747
    %v902 = vpack.c.b16 %v750, %v749
    %v903 = vpack.c.b16 %v752, %v751
    %v904 = vpack.c.b16 %v754, %v753
    %v905 = vpack.c.b16 %v756, %v755
    %v906 = vpack.c.b16 %v758, %v757
    %v907 = vpack.c.b16 %v760, %v759
    %v908 = vpack.c.b16 %v762, %v761
    %v909 = vpack.c.b16 %v764, %v763
    %v910 = vpack.c.b16 %v766, %v765
    %v911 = vpack.c.b16 %v768, %v767
    %v912 = vpack.c.b16 %v770, %v769
    %v913 = vpack.c.b16 %v772, %v771
    %v914 = vpack.c.b16 %v774, %v773
    %v915 = vpack.c.b16 %v776, %v775
    %v916 = vpack.c.b16 %v778, %v777
    %v917 = vpack.c.b16 %v780, %v779
    %v918 = vpack.c.b16 %v782, %v781
    %v919 = vpack.c.b16 %v784, %v783
    %v920 = vpack.c.b16 %v786, %v785
    %v921 = vpack.c.b16 %v788, %v787
    %v922 = vpack.c.b16 %v790, %v789
    %v923 = vpack.c.b16 %v792, %v791
    %v924 = vpack.c.b16 %v794, %v793
    %v925 = vpack.c.b16 %v796, %v795
    %v926 = vpack.c.b16 %v798, %v797
    %v932 = vunpack.c.l.b16 %v275
    %v933 = vunpack.c.l.b16 %v276
    %v934 = vunpack.c.l.b16 %v277
    %v935 = vunpack.c.l.b16 %v278
    %v936 = vunpack.c.l.b16 %v279
    %v937 = vpack.c.b16 %v933, %v932
    %v938 = vpack.c.b16 %v935, %v934
    %v939 = vpack.c.b16 %v936, %v936
    %vm942 = vcmask 293888
    %v944 = vsel %vm942, %v799, 0
    %v947 = vsel %vm942, %v800, 0
    %v950 = vsel %vm942, %v801, 0
    %v953 = vsel %vm942, %v802, 0
    %v956 = vsel %vm942, %v803, 0
    %v959 = vsel %vm942, %v804, 0
    %v962 = vsel %vm942, %v805, 0
    %v965 = vsel %vm942, %v806, 0
    %v968 = vsel %vm942, %v807, 0
    %v971 = vsel %vm942, %v808, 0
    %v974 = vsel %vm942, %v809, 0
    %v977 = vsel %vm942, %v810, 0
    %v980 = vsel %vm942, %v811, 0
    %v983 = vsel %vm942, %v812, 0
    %v986 = vsel %vm942, %v813, 0
    %v989 = vsel %vm942, %v814, 0
    %v992 = vsel %vm942, %v815, 0
    %v995 = vsel %vm942, %v816, 0
    %v998 = vsel %vm942, %v817, 0
    %v1001 = vsel %vm942, %v818, 0
    %v1004 = vsel %vm942, %v819, 0
    %v1007 = vsel %vm942, %v820, 0
    %v1010 = vsel %vm942, %v821, 0
    %v1013 = vsel %vm942, %v822, 0
    %v1016 = vsel %vm942, %v823, 0
    %v1019 = vsel %vm942, %v824, 0
    %v1022 = vsel %vm942, %v825, 0
    %v1025 = vsel %vm942, %v826, 0
    %v1028 = vsel %vm942, %v827, 0
    %v1031 = vsel %vm942, %v828, 0
    %v1034 = vsel %vm942, %v829, 0
    %v1037 = vsel %vm942, %v830, 0
    %v1040 = vsel %vm942, %v831, 0
    %v1043 = vsel %vm942, %v832, 0
    %v1046 = vsel %vm942, %v833, 0
    %v1049 = vsel %vm942, %v834, 0
    %v1052 = vsel %vm942, %v835, 0
    %v1055 = vsel %vm942, %v836, 0
    %v1058 = vsel %vm942, %v837, 0
    %v1061 = vsel %vm942, %v838, 0
    %v1064 = vsel %vm942, %v839, 0
    %v1067 = vsel %vm942, %v840, 0
    %v1070 = vsel %vm942, %v841, 0
    %v1073 = vsel %vm942, %v842, 0
    %v1076 = vsel %vm942, %v843, 0
    %v1079 = vsel %vm942, %v844, 0
    %v1082 = vsel %vm942, %v845, 0
    %v1085 = vsel %vm942, %v846, 0
    %v1088 = vsel %vm942, %v847, 0
    %v1091 = vsel %vm942, %v848, 0
    %v1094 = vsel %vm942, %v849, 0
    %v1097 = vsel %vm942, %v850, 0
    %v1100 = vsel %vm942, %v851, 0
    %v1103 = vsel %vm942, %v852, 0
    %v1106 = vsel %vm942, %v853, 0
    %v1109 = vsel %vm942, %v854, 0
    %v1112 = vsel %vm942, %v855, 0
    %v1115 = vsel %vm942, %v856, 0
    %v1118 = vsel %vm942, %v857, 0
    %v1121 = vsel %vm942, %v858, 0
    %v1124 = vsel %vm942, %v859, 0
    %v1127 = vsel %vm942, %v860, 0
    %v1130 = vsel %vm942, %v861, 0
    %v1133 = vsel %vm942, %v862, 0
    %v1136 = vsel %vm942, %v863, 0
    %v1139 = vsel %vm942, %v864, 0
    %v1142 = vsel %vm942, %v865, 0
    %v1145 = vsel %vm942, %v866, 0
    %v1148 = vsel %vm942, %v867, 0
    %v1151 = vsel %vm942, %v868, 0
    %v1154 = vsel %vm942, %v869, 0
    %v1157 = vsel %vm942, %v870, 0
    %v1160 = vsel %vm942, %v871, 0
    %v1163 = vsel %vm942, %v872, 0
    %v1166 = vsel %vm942, %v873, 0
    %v1169 = vsel %vm942, %v874, 0
    %v1172 = vsel %vm942, %v875, 0
    %v1175 = vsel %vm942, %v876, 0
    %v1178 = vsel %vm942, %v877, 0
    %v1181 = vsel %vm942, %v878, 0
    %v1184 = vsel %vm942, %v879, 0
    %v1187 = vsel %vm942, %v880, 0
    %v1190 = vsel %vm942, %v881, 0
    %v1193 = vsel %vm942, %v882, 0
    %v1196 = vsel %vm942, %v883, 0
    %v1199 = vsel %vm942, %v884, 0
    %v1202 = vsel %vm942, %v885, 0
    %v1205 = vsel %vm942, %v886, 0
    %v1208 = vsel %vm942, %v887, 0
    %v1211 = vsel %vm942, %v888, 0
    %v1214 = vsel %vm942, %v889, 0
    %v1217 = vsel %vm942, %v890, 0
    %v1220 = vsel %vm942, %v891, 0
    %v1223 = vsel %vm942, %v892, 0
    %v1226 = vsel %vm942, %v893, 0
    %v1229 = vsel %vm942, %v894, 0
    %v1232 = vsel %vm942, %v895, 0
    %v1235 = vsel %vm942, %v896, 0
    %v1238 = vsel %vm942, %v897, 0
    %v1241 = vsel %vm942, %v898, 0
    %v1244 = vsel %vm942, %v899, 0
    %v1247 = vsel %vm942, %v900, 0
    %v1250 = vsel %vm942, %v901, 0
    %v1253 = vsel %vm942, %v902, 0
    %v1256 = vsel %vm942, %v903, 0
    %v1259 = vsel %vm942, %v904, 0
    %v1262 = vsel %vm942, %v905, 0
    %v1265 = vsel %vm942, %v906, 0
    %v1268 = vsel %vm942, %v907, 0
    %v1271 = vsel %vm942, %v908, 0
    %v1274 = vsel %vm942, %v909, 0
    %v1277 = vsel %vm942, %v910, 0
    %v1280 = vsel %vm942, %v911, 0
    %v1283 = vsel %vm942, %v912, 0
    %v1286 = vsel %vm942, %v913, 0
    %v1289 = vsel %vm942, %v914, 0
    %v1292 = vsel %vm942, %v915, 0
    %v1295 = vsel %vm942, %v916, 0
    %v1298 = vsel %vm942, %v917, 0
    %v1301 = vsel %vm942, %v918, 0
    %v1304 = vsel %vm942, %v919, 0
    %v1307 = vsel %vm942, %v920, 0
    %v1310 = vsel %vm942, %v921, 0
    %v1313 = vsel %vm942, %v922, 0
    %v1316 = vsel %vm942, %v923, 0
    %v1319 = vsel %vm942, %v924, 0
    %v1322 = vsel %vm942, %v925, 0
    %v1325 = vsel %vm942, %v926, 0
    %vm1327 = vcmask 1041408
    %v1329 = vsel %vm1327, %v939, 0
    %1331 = vmatprep.subr.bf16.mxu0 0
    %1332 = vmatpush1.bf16.msra.mxu0 0
    %1333 = vmatprep.subr.bf16.mxu0 0
    %1334 = vmatpush1.bf16.msra.mxu0 0
    %1335 = vmatprep.subr.bf16.mxu0 0
    %1336 = vmatpush1.bf16.msra.mxu0 0
    %1337 = vmatprep.subr.bf16.mxu0 0
    %1338 = vmatpush1.bf16.msra.mxu0 0
    %1339 = vmatprep.subr.bf16.mxu0 0
    %1340 = vmatpush1.bf16.msra.mxu0 0
    %1341 = vmatprep.subr.bf16.mxu0 0
    %1342 = vmatpush1.bf16.msra.mxu0 %v1329
    %1343 = vmatprep.subr.bf16.mxu0 0
    %1344 = vmatpush1.bf16.msra.mxu0 %v938
    %1345 = vmatprep.subr.bf16.mxu0 0
    %1346 = vmatpush1.bf16.msra.mxu0 %v937
    %1347 = vmatprep.subr.bf16.mxu0 0
    %1348 = vmatpush2.bf16.msra.mxu0 0
    %1349 = vmatprep.subr.bf16.mxu0 0
    %1350 = vmatpush2.bf16.msra.mxu0 0
    %1351 = vmatprep.subr.bf16.mxu0 0
    %1352 = vmatpush2.bf16.msra.mxu0 0
    %1353 = vmatprep.subr.bf16.mxu0 0
    %1354 = vmatpush2.bf16.msra.mxu0 0
    %1355 = vmatprep.subr.bf16.mxu0 0
    %1356 = vmatpush2.bf16.msra.mxu0 0
    %1357 = vmatprep.subr.bf16.mxu0 0
    %1358 = vmatpush2.bf16.msra.mxu0 0
    %1359 = vmatprep.subr.bf16.mxu0 0
    %1360 = vmatpush2.bf16.msra.mxu0 0
    %1361 = vmatprep.subr.bf16.mxu0 0
    %1362 = vmatpush2.bf16.msra.mxu0 0
    %1363 = vmatprep.mubr.bf16.mxu0 0
    %1364 = vmatmul.mubr.bf16.gmra.mxu0 %v944
    %v1365 = vpop.f32.mrf.mxu0
    %v1366 = vadd.f32 %v285, %v1365
    %v1367 = vpop.f32.mrf.mxu0
    %v1368 = vpop.f32.mrf.mxu0
    %v1369 = vadd.f32 %v285, %v1368
    %v1370 = vpop.f32.mrf.mxu0
    %1371 = vmatprep.mubr.bf16.mxu0 0
    %1372 = vmatmul.mubr.bf16.gmra.mxu0 %v947
    %v1373 = vpop.f32.mrf.mxu0
    %v1374 = vadd.f32 %v285, %v1373
    %v1375 = vpop.f32.mrf.mxu0
    %v1376 = vpop.f32.mrf.mxu0
    %v1377 = vadd.f32 %v285, %v1376
    %v1378 = vpop.f32.mrf.mxu0
    %1379 = vmatprep.mubr.bf16.mxu0 0
    %1380 = vmatmul.mubr.bf16.gmra.mxu0 %v950
    %v1381 = vpop.f32.mrf.mxu0
    %v1382 = vadd.f32 %v285, %v1381
    %v1383 = vpop.f32.mrf.mxu0
    %v1384 = vpop.f32.mrf.mxu0
    %v1385 = vadd.f32 %v285, %v1384
    %v1386 = vpop.f32.mrf.mxu0
    %1387 = vmatprep.mubr.bf16.mxu0 0
    %1388 = vmatmul.mubr.bf16.gmra.mxu0 %v953
    %v1389 = vpop.f32.mrf.mxu0
    %v1390 = vadd.f32 %v285, %v1389
    %v1391 = vpop.f32.mrf.mxu0
    %v1392 = vpop.f32.mrf.mxu0
    %v1393 = vadd.f32 %v285, %v1392
    %v1394 = vpop.f32.mrf.mxu0
    %1395 = vmatprep.mubr.bf16.mxu0 0
    %1396 = vmatmul.mubr.bf16.gmra.mxu0 %v956
    %v1397 = vpop.f32.mrf.mxu0
    %v1398 = vadd.f32 %v285, %v1397
    %v1399 = vpop.f32.mrf.mxu0
    %v1400 = vpop.f32.mrf.mxu0
    %v1401 = vadd.f32 %v285, %v1400
    %v1402 = vpop.f32.mrf.mxu0
    %1403 = vmatprep.mubr.bf16.mxu0 0
    %1404 = vmatmul.mubr.bf16.gmra.mxu0 %v959
    %v1405 = vpop.f32.mrf.mxu0
    %v1406 = vadd.f32 %v285, %v1405
    %v1407 = vpop.f32.mrf.mxu0
    %v1408 = vpop.f32.mrf.mxu0
    %v1409 = vadd.f32 %v285, %v1408
    %v1410 = vpop.f32.mrf.mxu0
    %1411 = vmatprep.mubr.bf16.mxu0 0
    %1412 = vmatmul.mubr.bf16.gmra.mxu0 %v962
    %v1413 = vpop.f32.mrf.mxu0
    %v1414 = vadd.f32 %v285, %v1413
    %v1415 = vpop.f32.mrf.mxu0
    %v1416 = vpop.f32.mrf.mxu0
    %v1417 = vadd.f32 %v285, %v1416
    %v1418 = vpop.f32.mrf.mxu0
    %1419 = vmatprep.mubr.bf16.mxu0 0
    %1420 = vmatmul.mubr.bf16.gmra.mxu0 %v965
    %v1421 = vpop.f32.mrf.mxu0
    %v1422 = vadd.f32 %v285, %v1421
    %v1423 = vpop.f32.mrf.mxu0
    %v1424 = vpop.f32.mrf.mxu0
    %v1425 = vadd.f32 %v285, %v1424
    %v1426 = vpop.f32.mrf.mxu0
    %1427 = vmatprep.mubr.bf16.mxu0 0
    %1428 = vmatmul.mubr.bf16.gmra.mxu0 %v968
    %v1429 = vpop.f32.mrf.mxu0
    %v1430 = vadd.f32 %v285, %v1429
    %v1431 = vpop.f32.mrf.mxu0
    %v1432 = vpop.f32.mrf.mxu0
    %v1433 = vadd.f32 %v285, %v1432
    %v1434 = vpop.f32.mrf.mxu0
    %1435 = vmatprep.mubr.bf16.mxu0 0
    %1436 = vmatmul.mubr.bf16.gmra.mxu0 %v971
    %v1437 = vpop.f32.mrf.mxu0
    %v1438 = vadd.f32 %v285, %v1437
    %v1439 = vpop.f32.mrf.mxu0
    %v1440 = vpop.f32.mrf.mxu0
    %v1441 = vadd.f32 %v285, %v1440
    %v1442 = vpop.f32.mrf.mxu0
    %1443 = vmatprep.mubr.bf16.mxu0 0
    %1444 = vmatmul.mubr.bf16.gmra.mxu0 %v974
    %v1445 = vpop.f32.mrf.mxu0
    %v1446 = vadd.f32 %v285, %v1445
    %v1447 = vpop.f32.mrf.mxu0
    %v1448 = vpop.f32.mrf.mxu0
    %v1449 = vadd.f32 %v285, %v1448
    %v1450 = vpop.f32.mrf.mxu0
    %1451 = vmatprep.mubr.bf16.mxu0 0
    %1452 = vmatmul.mubr.bf16.gmra.mxu0 %v977
    %v1453 = vpop.f32.mrf.mxu0
    %v1454 = vadd.f32 %v285, %v1453
    %v1455 = vpop.f32.mrf.mxu0
    %v1456 = vpop.f32.mrf.mxu0
    %v1457 = vadd.f32 %v285, %v1456
    %v1458 = vpop.f32.mrf.mxu0
    %1459 = vmatprep.mubr.bf16.mxu0 0
    %1460 = vmatmul.mubr.bf16.gmra.mxu0 %v980
    %v1461 = vpop.f32.mrf.mxu0
    %v1462 = vadd.f32 %v285, %v1461
    %v1463 = vpop.f32.mrf.mxu0
    %v1464 = vpop.f32.mrf.mxu0
    %v1465 = vadd.f32 %v285, %v1464
    %v1466 = vpop.f32.mrf.mxu0
    %1467 = vmatprep.mubr.bf16.mxu0 0
    %1468 = vmatmul.mubr.bf16.gmra.mxu0 %v983
    %v1469 = vpop.f32.mrf.mxu0
    %v1470 = vadd.f32 %v285, %v1469
    %v1471 = vpop.f32.mrf.mxu0
    %v1472 = vpop.f32.mrf.mxu0
    %v1473 = vadd.f32 %v285, %v1472
    %v1474 = vpop.f32.mrf.mxu0
    %1475 = vmatprep.mubr.bf16.mxu0 0
    %1476 = vmatmul.mubr.bf16.gmra.mxu0 %v986
    %v1477 = vpop.f32.mrf.mxu0
    %v1478 = vadd.f32 %v285, %v1477
    %v1479 = vpop.f32.mrf.mxu0
    %v1480 = vpop.f32.mrf.mxu0
    %v1481 = vadd.f32 %v285, %v1480
    %v1482 = vpop.f32.mrf.mxu0
    %1483 = vmatprep.mubr.bf16.mxu0 0
    %1484 = vmatmul.mubr.bf16.gmra.mxu0 %v989
    %v1485 = vpop.f32.mrf.mxu0
    %v1486 = vadd.f32 %v285, %v1485
    %v1487 = vpop.f32.mrf.mxu0
    %v1488 = vpop.f32.mrf.mxu0
    %v1489 = vadd.f32 %v285, %v1488
    %v1490 = vpop.f32.mrf.mxu0
    %1491 = vmatprep.mubr.bf16.mxu0 0
    %1492 = vmatmul.mubr.bf16.gmra.mxu0 %v992
    %v1493 = vpop.f32.mrf.mxu0
    %v1494 = vadd.f32 %v285, %v1493
    %v1495 = vpop.f32.mrf.mxu0
    %v1496 = vpop.f32.mrf.mxu0
    %v1497 = vadd.f32 %v285, %v1496
    %v1498 = vpop.f32.mrf.mxu0
    %1499 = vmatprep.mubr.bf16.mxu0 0
    %1500 = vmatmul.mubr.bf16.gmra.mxu0 %v995
    %v1501 = vpop.f32.mrf.mxu0
    %v1502 = vadd.f32 %v285, %v1501
    %v1503 = vpop.f32.mrf.mxu0
    %v1504 = vpop.f32.mrf.mxu0
    %v1505 = vadd.f32 %v285, %v1504
    %v1506 = vpop.f32.mrf.mxu0
    %1507 = vmatprep.mubr.bf16.mxu0 0
    %1508 = vmatmul.mubr.bf16.gmra.mxu0 %v998
    %v1509 = vpop.f32.mrf.mxu0
    %v1510 = vadd.f32 %v285, %v1509
    %v1511 = vpop.f32.mrf.mxu0
    %v1512 = vpop.f32.mrf.mxu0
    %v1513 = vadd.f32 %v285, %v1512
    %v1514 = vpop.f32.mrf.mxu0
    %1515 = vmatprep.mubr.bf16.mxu0 0
    %1516 = vmatmul.mubr.bf16.gmra.mxu0 %v1001
    %v1517 = vpop.f32.mrf.mxu0
    %v1518 = vadd.f32 %v285, %v1517
    %v1519 = vpop.f32.mrf.mxu0
    %v1520 = vpop.f32.mrf.mxu0
    %v1521 = vadd.f32 %v285, %v1520
    %v1522 = vpop.f32.mrf.mxu0
    %1523 = vmatprep.mubr.bf16.mxu0 0
    %1524 = vmatmul.mubr.bf16.gmra.mxu0 %v1004
    %v1525 = vpop.f32.mrf.mxu0
    %v1526 = vadd.f32 %v285, %v1525
    %v1527 = vpop.f32.mrf.mxu0
    %v1528 = vpop.f32.mrf.mxu0
    %v1529 = vadd.f32 %v285, %v1528
    %v1530 = vpop.f32.mrf.mxu0
    %1531 = vmatprep.mubr.bf16.mxu0 0
    %1532 = vmatmul.mubr.bf16.gmra.mxu0 %v1007
    %v1533 = vpop.f32.mrf.mxu0
    %v1534 = vadd.f32 %v285, %v1533
    %v1535 = vpop.f32.mrf.mxu0
    %v1536 = vpop.f32.mrf.mxu0
    %v1537 = vadd.f32 %v285, %v1536
    %v1538 = vpop.f32.mrf.mxu0
    %1539 = vmatprep.mubr.bf16.mxu0 0
    %1540 = vmatmul.mubr.bf16.gmra.mxu0 %v1010
    %v1541 = vpop.f32.mrf.mxu0
    %v1542 = vadd.f32 %v285, %v1541
    %v1543 = vpop.f32.mrf.mxu0
    %v1544 = vpop.f32.mrf.mxu0
    %v1545 = vadd.f32 %v285, %v1544
    %v1546 = vpop.f32.mrf.mxu0
    %1547 = vmatprep.mubr.bf16.mxu0 0
    %1548 = vmatmul.mubr.bf16.gmra.mxu0 %v1013
    %v1549 = vpop.f32.mrf.mxu0
    %v1550 = vadd.f32 %v285, %v1549
    %v1551 = vpop.f32.mrf.mxu0
    %v1552 = vpop.f32.mrf.mxu0
    %v1553 = vadd.f32 %v285, %v1552
    %v1554 = vpop.f32.mrf.mxu0
    %1555 = vmatprep.mubr.bf16.mxu0 0
    %1556 = vmatmul.mubr.bf16.gmra.mxu0 %v1016
    %v1557 = vpop.f32.mrf.mxu0
    %v1558 = vadd.f32 %v285, %v1557
    %v1559 = vpop.f32.mrf.mxu0
    %v1560 = vpop.f32.mrf.mxu0
    %v1561 = vadd.f32 %v285, %v1560
    %v1562 = vpop.f32.mrf.mxu0
    %1563 = vmatprep.mubr.bf16.mxu0 0
    %1564 = vmatmul.mubr.bf16.gmra.mxu0 %v1019
    %v1565 = vpop.f32.mrf.mxu0
    %v1566 = vadd.f32 %v285, %v1565
    %v1567 = vpop.f32.mrf.mxu0
    %v1568 = vpop.f32.mrf.mxu0
    %v1569 = vadd.f32 %v285, %v1568
    %v1570 = vpop.f32.mrf.mxu0
    %1571 = vmatprep.mubr.bf16.mxu0 0
    %1572 = vmatmul.mubr.bf16.gmra.mxu0 %v1022
    %v1573 = vpop.f32.mrf.mxu0
    %v1574 = vadd.f32 %v285, %v1573
    %v1575 = vpop.f32.mrf.mxu0
    %v1576 = vpop.f32.mrf.mxu0
    %v1577 = vadd.f32 %v285, %v1576
    %v1578 = vpop.f32.mrf.mxu0
    %1579 = vmatprep.mubr.bf16.mxu0 0
    %1580 = vmatmul.mubr.bf16.gmra.mxu0 %v1025
    %v1581 = vpop.f32.mrf.mxu0
    %v1582 = vadd.f32 %v285, %v1581
    %v1583 = vpop.f32.mrf.mxu0
    %v1584 = vpop.f32.mrf.mxu0
    %v1585 = vadd.f32 %v285, %v1584
    %v1586 = vpop.f32.mrf.mxu0
    %1587 = vmatprep.mubr.bf16.mxu0 0
    %1588 = vmatmul.mubr.bf16.gmra.mxu0 %v1028
    %v1589 = vpop.f32.mrf.mxu0
    %v1590 = vadd.f32 %v285, %v1589
    %v1591 = vpop.f32.mrf.mxu0
    %v1592 = vpop.f32.mrf.mxu0
    %v1593 = vadd.f32 %v285, %v1592
    %v1594 = vpop.f32.mrf.mxu0
    %1595 = vmatprep.mubr.bf16.mxu0 0
    %1596 = vmatmul.mubr.bf16.gmra.mxu0 %v1031
    %v1597 = vpop.f32.mrf.mxu0
    %v1598 = vadd.f32 %v285, %v1597
    %v1599 = vpop.f32.mrf.mxu0
    %v1600 = vpop.f32.mrf.mxu0
    %v1601 = vadd.f32 %v285, %v1600
    %v1602 = vpop.f32.mrf.mxu0
    %1603 = vmatprep.mubr.bf16.mxu0 0
    %1604 = vmatmul.mubr.bf16.gmra.mxu0 %v1034
    %v1605 = vpop.f32.mrf.mxu0
    %v1606 = vadd.f32 %v285, %v1605
    %v1607 = vpop.f32.mrf.mxu0
    %v1608 = vpop.f32.mrf.mxu0
    %v1609 = vadd.f32 %v285, %v1608
    %v1610 = vpop.f32.mrf.mxu0
    %1611 = vmatprep.mubr.bf16.mxu0 0
    %1612 = vmatmul.mubr.bf16.gmra.mxu0 %v1037
    %v1613 = vpop.f32.mrf.mxu0
    %v1614 = vadd.f32 %v285, %v1613
    %v1615 = vpop.f32.mrf.mxu0
    %v1616 = vpop.f32.mrf.mxu0
    %v1617 = vadd.f32 %v285, %v1616
    %v1618 = vpop.f32.mrf.mxu0
    %1619 = vmatprep.mubr.bf16.mxu0 0
    %1620 = vmatmul.mubr.bf16.gmra.mxu0 %v1040
    %v1621 = vpop.f32.mrf.mxu0
    %v1622 = vadd.f32 %v285, %v1621
    %v1623 = vpop.f32.mrf.mxu0
    %v1624 = vpop.f32.mrf.mxu0
    %v1625 = vadd.f32 %v285, %v1624
    %v1626 = vpop.f32.mrf.mxu0
    %1627 = vmatprep.mubr.bf16.mxu0 0
    %1628 = vmatmul.mubr.bf16.gmra.mxu0 %v1043
    %v1629 = vpop.f32.mrf.mxu0
    %v1630 = vadd.f32 %v285, %v1629
    %v1631 = vpop.f32.mrf.mxu0
    %v1632 = vpop.f32.mrf.mxu0
    %v1633 = vadd.f32 %v285, %v1632
    %v1634 = vpop.f32.mrf.mxu0
    %1635 = vmatprep.mubr.bf16.mxu0 0
    %1636 = vmatmul.mubr.bf16.gmra.mxu0 %v1046
    %v1637 = vpop.f32.mrf.mxu0
    %v1638 = vadd.f32 %v285, %v1637
    %v1639 = vpop.f32.mrf.mxu0
    %v1640 = vpop.f32.mrf.mxu0
    %v1641 = vadd.f32 %v285, %v1640
    %v1642 = vpop.f32.mrf.mxu0
    %1643 = vmatprep.mubr.bf16.mxu0 0
    %1644 = vmatmul.mubr.bf16.gmra.mxu0 %v1049
    %v1645 = vpop.f32.mrf.mxu0
    %v1646 = vadd.f32 %v285, %v1645
    %v1647 = vpop.f32.mrf.mxu0
    %v1648 = vpop.f32.mrf.mxu0
    %v1649 = vadd.f32 %v285, %v1648
    %v1650 = vpop.f32.mrf.mxu0
    %1651 = vmatprep.mubr.bf16.mxu0 0
    %1652 = vmatmul.mubr.bf16.gmra.mxu0 %v1052
    %v1653 = vpop.f32.mrf.mxu0
    %v1654 = vadd.f32 %v285, %v1653
    %v1655 = vpop.f32.mrf.mxu0
    %v1656 = vpop.f32.mrf.mxu0
    %v1657 = vadd.f32 %v285, %v1656
    %v1658 = vpop.f32.mrf.mxu0
    %1659 = vmatprep.mubr.bf16.mxu0 0
    %1660 = vmatmul.mubr.bf16.gmra.mxu0 %v1055
    %v1661 = vpop.f32.mrf.mxu0
    %v1662 = vadd.f32 %v285, %v1661
    %v1663 = vpop.f32.mrf.mxu0
    %v1664 = vpop.f32.mrf.mxu0
    %v1665 = vadd.f32 %v285, %v1664
    %v1666 = vpop.f32.mrf.mxu0
    %1667 = vmatprep.mubr.bf16.mxu0 0
    %1668 = vmatmul.mubr.bf16.gmra.mxu0 %v1058
    %v1669 = vpop.f32.mrf.mxu0
    %v1670 = vadd.f32 %v285, %v1669
    %v1671 = vpop.f32.mrf.mxu0
    %v1672 = vpop.f32.mrf.mxu0
    %v1673 = vadd.f32 %v285, %v1672
    %v1674 = vpop.f32.mrf.mxu0
    %1675 = vmatprep.mubr.bf16.mxu0 0
    %1676 = vmatmul.mubr.bf16.gmra.mxu0 %v1061
    %v1677 = vpop.f32.mrf.mxu0
    %v1678 = vadd.f32 %v285, %v1677
    %v1679 = vpop.f32.mrf.mxu0
    %v1680 = vpop.f32.mrf.mxu0
    %v1681 = vadd.f32 %v285, %v1680
    %v1682 = vpop.f32.mrf.mxu0
    %1683 = vmatprep.mubr.bf16.mxu0 0
    %1684 = vmatmul.mubr.bf16.gmra.mxu0 %v1064
    %v1685 = vpop.f32.mrf.mxu0
    %v1686 = vadd.f32 %v285, %v1685
    %v1687 = vpop.f32.mrf.mxu0
    %v1688 = vpop.f32.mrf.mxu0
    %v1689 = vadd.f32 %v285, %v1688
    %v1690 = vpop.f32.mrf.mxu0
    %1691 = vmatprep.mubr.bf16.mxu0 0
    %1692 = vmatmul.mubr.bf16.gmra.mxu0 %v1067
    %v1693 = vpop.f32.mrf.mxu0
    %v1694 = vadd.f32 %v285, %v1693
    %v1695 = vpop.f32.mrf.mxu0
    %v1696 = vpop.f32.mrf.mxu0
    %v1697 = vadd.f32 %v285, %v1696
    %v1698 = vpop.f32.mrf.mxu0
    %1699 = vmatprep.mubr.bf16.mxu0 0
    %1700 = vmatmul.mubr.bf16.gmra.mxu0 %v1070
    %v1701 = vpop.f32.mrf.mxu0
    %v1702 = vadd.f32 %v285, %v1701
    %v1703 = vpop.f32.mrf.mxu0
    %v1704 = vpop.f32.mrf.mxu0
    %v1705 = vadd.f32 %v285, %v1704
    %v1706 = vpop.f32.mrf.mxu0
    %1707 = vmatprep.mubr.bf16.mxu0 0
    %1708 = vmatmul.mubr.bf16.gmra.mxu0 %v1073
    %v1709 = vpop.f32.mrf.mxu0
    %v1710 = vadd.f32 %v285, %v1709
    %v1711 = vpop.f32.mrf.mxu0
    %v1712 = vpop.f32.mrf.mxu0
    %v1713 = vadd.f32 %v285, %v1712
    %v1714 = vpop.f32.mrf.mxu0
    %1715 = vmatprep.mubr.bf16.mxu0 0
    %1716 = vmatmul.mubr.bf16.gmra.mxu0 %v1076
    %v1717 = vpop.f32.mrf.mxu0
    %v1718 = vadd.f32 %v285, %v1717
    %v1719 = vpop.f32.mrf.mxu0
    %v1720 = vpop.f32.mrf.mxu0
    %v1721 = vadd.f32 %v285, %v1720
    %v1722 = vpop.f32.mrf.mxu0
    %1723 = vmatprep.mubr.bf16.mxu0 0
    %1724 = vmatmul.mubr.bf16.gmra.mxu0 %v1079
    %v1725 = vpop.f32.mrf.mxu0
    %v1726 = vadd.f32 %v285, %v1725
    %v1727 = vpop.f32.mrf.mxu0
    %v1728 = vpop.f32.mrf.mxu0
    %v1729 = vadd.f32 %v285, %v1728
    %v1730 = vpop.f32.mrf.mxu0
    %1731 = vmatprep.mubr.bf16.mxu0 0
    %1732 = vmatmul.mubr.bf16.gmra.mxu0 %v1082
    %v1733 = vpop.f32.mrf.mxu0
    %v1734 = vadd.f32 %v285, %v1733
    %v1735 = vpop.f32.mrf.mxu0
    %v1736 = vpop.f32.mrf.mxu0
    %v1737 = vadd.f32 %v285, %v1736
    %v1738 = vpop.f32.mrf.mxu0
    %1739 = vmatprep.mubr.bf16.mxu0 0
    %1740 = vmatmul.mubr.bf16.gmra.mxu0 %v1085
    %v1741 = vpop.f32.mrf.mxu0
    %v1742 = vadd.f32 %v285, %v1741
    %v1743 = vpop.f32.mrf.mxu0
    %v1744 = vpop.f32.mrf.mxu0
    %v1745 = vadd.f32 %v285, %v1744
    %v1746 = vpop.f32.mrf.mxu0
    %1747 = vmatprep.mubr.bf16.mxu0 0
    %1748 = vmatmul.mubr.bf16.gmra.mxu0 %v1088
    %v1749 = vpop.f32.mrf.mxu0
    %v1750 = vadd.f32 %v285, %v1749
    %v1751 = vpop.f32.mrf.mxu0
    %v1752 = vpop.f32.mrf.mxu0
    %v1753 = vadd.f32 %v285, %v1752
    %v1754 = vpop.f32.mrf.mxu0
    %1755 = vmatprep.mubr.bf16.mxu0 0
    %1756 = vmatmul.mubr.bf16.gmra.mxu0 %v1091
    %v1757 = vpop.f32.mrf.mxu0
    %v1758 = vadd.f32 %v285, %v1757
    %v1759 = vpop.f32.mrf.mxu0
    %v1760 = vpop.f32.mrf.mxu0
    %v1761 = vadd.f32 %v285, %v1760
    %v1762 = vpop.f32.mrf.mxu0
    %1763 = vmatprep.mubr.bf16.mxu0 0
    %1764 = vmatmul.mubr.bf16.gmra.mxu0 %v1094
    %v1765 = vpop.f32.mrf.mxu0
    %v1766 = vadd.f32 %v285, %v1765
    %v1767 = vpop.f32.mrf.mxu0
    %v1768 = vpop.f32.mrf.mxu0
    %v1769 = vadd.f32 %v285, %v1768
    %v1770 = vpop.f32.mrf.mxu0
    %1771 = vmatprep.mubr.bf16.mxu0 0
    %1772 = vmatmul.mubr.bf16.gmra.mxu0 %v1097
    %v1773 = vpop.f32.mrf.mxu0
    %v1774 = vadd.f32 %v285, %v1773
    %v1775 = vpop.f32.mrf.mxu0
    %v1776 = vpop.f32.mrf.mxu0
    %v1777 = vadd.f32 %v285, %v1776
    %v1778 = vpop.f32.mrf.mxu0
    %1779 = vmatprep.mubr.bf16.mxu0 0
    %1780 = vmatmul.mubr.bf16.gmra.mxu0 %v1100
    %v1781 = vpop.f32.mrf.mxu0
    %v1782 = vadd.f32 %v285, %v1781
    %v1783 = vpop.f32.mrf.mxu0
    %v1784 = vpop.f32.mrf.mxu0
    %v1785 = vadd.f32 %v285, %v1784
    %v1786 = vpop.f32.mrf.mxu0
    %1787 = vmatprep.mubr.bf16.mxu0 0
    %1788 = vmatmul.mubr.bf16.gmra.mxu0 %v1103
    %v1789 = vpop.f32.mrf.mxu0
    %v1790 = vadd.f32 %v285, %v1789
    %v1791 = vpop.f32.mrf.mxu0
    %v1792 = vpop.f32.mrf.mxu0
    %v1793 = vadd.f32 %v285, %v1792
    %v1794 = vpop.f32.mrf.mxu0
    %1795 = vmatprep.mubr.bf16.mxu0 0
    %1796 = vmatmul.mubr.bf16.gmra.mxu0 %v1106
    %v1797 = vpop.f32.mrf.mxu0
    %v1798 = vadd.f32 %v285, %v1797
    %v1799 = vpop.f32.mrf.mxu0
    %v1800 = vpop.f32.mrf.mxu0
    %v1801 = vadd.f32 %v285, %v1800
    %v1802 = vpop.f32.mrf.mxu0
    %1803 = vmatprep.mubr.bf16.mxu0 0
    %1804 = vmatmul.mubr.bf16.gmra.mxu0 %v1109
    %v1805 = vpop.f32.mrf.mxu0
    %v1806 = vadd.f32 %v285, %v1805
    %v1807 = vpop.f32.mrf.mxu0
    %v1808 = vpop.f32.mrf.mxu0
    %v1809 = vadd.f32 %v285, %v1808
    %v1810 = vpop.f32.mrf.mxu0
    %1811 = vmatprep.mubr.bf16.mxu0 0
    %1812 = vmatmul.mubr.bf16.gmra.mxu0 %v1112
    %v1813 = vpop.f32.mrf.mxu0
    %v1814 = vadd.f32 %v285, %v1813
    %v1815 = vpop.f32.mrf.mxu0
    %v1816 = vpop.f32.mrf.mxu0
    %v1817 = vadd.f32 %v285, %v1816
    %v1818 = vpop.f32.mrf.mxu0
    %1819 = vmatprep.mubr.bf16.mxu0 0
    %1820 = vmatmul.mubr.bf16.gmra.mxu0 %v1115
    %v1821 = vpop.f32.mrf.mxu0
    %v1822 = vadd.f32 %v285, %v1821
    %v1823 = vpop.f32.mrf.mxu0
    %v1824 = vpop.f32.mrf.mxu0
    %v1825 = vadd.f32 %v285, %v1824
    %v1826 = vpop.f32.mrf.mxu0
    %1827 = vmatprep.mubr.bf16.mxu0 0
    %1828 = vmatmul.mubr.bf16.gmra.mxu0 %v1118
    %v1829 = vpop.f32.mrf.mxu0
    %v1830 = vadd.f32 %v285, %v1829
    %v1831 = vpop.f32.mrf.mxu0
    %v1832 = vpop.f32.mrf.mxu0
    %v1833 = vadd.f32 %v285, %v1832
    %v1834 = vpop.f32.mrf.mxu0
    %1835 = vmatprep.mubr.bf16.mxu0 0
    %1836 = vmatmul.mubr.bf16.gmra.mxu0 %v1121
    %v1837 = vpop.f32.mrf.mxu0
    %v1838 = vadd.f32 %v285, %v1837
    %v1839 = vpop.f32.mrf.mxu0
    %v1840 = vpop.f32.mrf.mxu0
    %v1841 = vadd.f32 %v285, %v1840
    %v1842 = vpop.f32.mrf.mxu0
    %1843 = vmatprep.mubr.bf16.mxu0 0
    %1844 = vmatmul.mubr.bf16.gmra.mxu0 %v1124
    %v1845 = vpop.f32.mrf.mxu0
    %v1846 = vadd.f32 %v285, %v1845
    %v1847 = vpop.f32.mrf.mxu0
    %v1848 = vpop.f32.mrf.mxu0
    %v1849 = vadd.f32 %v285, %v1848
    %v1850 = vpop.f32.mrf.mxu0
    %1851 = vmatprep.mubr.bf16.mxu0 0
    %1852 = vmatmul.mubr.bf16.gmra.mxu0 %v1127
    %v1853 = vpop.f32.mrf.mxu0
    %v1854 = vadd.f32 %v285, %v1853
    %v1855 = vpop.f32.mrf.mxu0
    %v1856 = vpop.f32.mrf.mxu0
    %v1857 = vadd.f32 %v285, %v1856
    %v1858 = vpop.f32.mrf.mxu0
    %1859 = vmatprep.mubr.bf16.mxu0 0
    %1860 = vmatmul.mubr.bf16.gmra.mxu0 %v1130
    %v1861 = vpop.f32.mrf.mxu0
    %v1862 = vadd.f32 %v285, %v1861
    %v1863 = vpop.f32.mrf.mxu0
    %v1864 = vpop.f32.mrf.mxu0
    %v1865 = vadd.f32 %v285, %v1864
    %v1866 = vpop.f32.mrf.mxu0
    %1867 = vmatprep.mubr.bf16.mxu0 0
    %1868 = vmatmul.mubr.bf16.gmra.mxu0 %v1133
    %v1869 = vpop.f32.mrf.mxu0
    %v1870 = vadd.f32 %v285, %v1869
    %v1871 = vpop.f32.mrf.mxu0
    %v1872 = vpop.f32.mrf.mxu0
    %v1873 = vadd.f32 %v285, %v1872
    %v1874 = vpop.f32.mrf.mxu0
    %1875 = vmatprep.mubr.bf16.mxu0 0
    %1876 = vmatmul.mubr.bf16.gmra.mxu0 %v1136
    %v1877 = vpop.f32.mrf.mxu0
    %v1878 = vadd.f32 %v285, %v1877
    %v1879 = vpop.f32.mrf.mxu0
    %v1880 = vpop.f32.mrf.mxu0
    %v1881 = vadd.f32 %v285, %v1880
    %v1882 = vpop.f32.mrf.mxu0
    %1883 = vmatprep.mubr.bf16.mxu0 0
    %1884 = vmatmul.mubr.bf16.gmra.mxu0 %v1139
    %v1885 = vpop.f32.mrf.mxu0
    %v1886 = vadd.f32 %v285, %v1885
    %v1887 = vpop.f32.mrf.mxu0
    %v1888 = vpop.f32.mrf.mxu0
    %v1889 = vadd.f32 %v285, %v1888
    %v1890 = vpop.f32.mrf.mxu0
    %1891 = vmatprep.mubr.bf16.mxu0 0
    %1892 = vmatmul.mubr.bf16.gmra.mxu0 %v1142
    %v1893 = vpop.f32.mrf.mxu0
    %v1894 = vadd.f32 %v285, %v1893
    %v1895 = vpop.f32.mrf.mxu0
    %v1896 = vpop.f32.mrf.mxu0
    %v1897 = vadd.f32 %v285, %v1896
    %v1898 = vpop.f32.mrf.mxu0
    %1899 = vmatprep.mubr.bf16.mxu0 0
    %1900 = vmatmul.mubr.bf16.gmra.mxu0 %v1145
    %v1901 = vpop.f32.mrf.mxu0
    %v1902 = vadd.f32 %v285, %v1901
    %v1903 = vpop.f32.mrf.mxu0
    %v1904 = vpop.f32.mrf.mxu0
    %v1905 = vadd.f32 %v285, %v1904
    %v1906 = vpop.f32.mrf.mxu0
    %1907 = vmatprep.mubr.bf16.mxu0 0
    %1908 = vmatmul.mubr.bf16.gmra.mxu0 %v1148
    %v1909 = vpop.f32.mrf.mxu0
    %v1910 = vadd.f32 %v285, %v1909
    %v1911 = vpop.f32.mrf.mxu0
    %v1912 = vpop.f32.mrf.mxu0
    %v1913 = vadd.f32 %v285, %v1912
    %v1914 = vpop.f32.mrf.mxu0
    %1915 = vmatprep.mubr.bf16.mxu0 0
    %1916 = vmatmul.mubr.bf16.gmra.mxu0 %v1151
    %v1917 = vpop.f32.mrf.mxu0
    %v1918 = vadd.f32 %v285, %v1917
    %v1919 = vpop.f32.mrf.mxu0
    %v1920 = vpop.f32.mrf.mxu0
    %v1921 = vadd.f32 %v285, %v1920
    %v1922 = vpop.f32.mrf.mxu0
    %1923 = vmatprep.mubr.bf16.mxu0 0
    %1924 = vmatmul.mubr.bf16.gmra.mxu0 %v1154
    %v1925 = vpop.f32.mrf.mxu0
    %v1926 = vadd.f32 %v285, %v1925
    %v1927 = vpop.f32.mrf.mxu0
    %v1928 = vpop.f32.mrf.mxu0
    %v1929 = vadd.f32 %v285, %v1928
    %v1930 = vpop.f32.mrf.mxu0
    %1931 = vmatprep.mubr.bf16.mxu0 0
    %1932 = vmatmul.mubr.bf16.gmra.mxu0 %v1157
    %v1933 = vpop.f32.mrf.mxu0
    %v1934 = vadd.f32 %v285, %v1933
    %v1935 = vpop.f32.mrf.mxu0
    %v1936 = vpop.f32.mrf.mxu0
    %v1937 = vadd.f32 %v285, %v1936
    %v1938 = vpop.f32.mrf.mxu0
    %1939 = vmatprep.mubr.bf16.mxu0 0
    %1940 = vmatmul.mubr.bf16.gmra.mxu0 %v1160
    %v1941 = vpop.f32.mrf.mxu0
    %v1942 = vadd.f32 %v285, %v1941
    %v1943 = vpop.f32.mrf.mxu0
    %v1944 = vpop.f32.mrf.mxu0
    %v1945 = vadd.f32 %v285, %v1944
    %v1946 = vpop.f32.mrf.mxu0
    %1947 = vmatprep.mubr.bf16.mxu0 0
    %1948 = vmatmul.mubr.bf16.gmra.mxu0 %v1163
    %v1949 = vpop.f32.mrf.mxu0
    %v1950 = vadd.f32 %v285, %v1949
    %v1951 = vpop.f32.mrf.mxu0
    %v1952 = vpop.f32.mrf.mxu0
    %v1953 = vadd.f32 %v285, %v1952
    %v1954 = vpop.f32.mrf.mxu0
    %1955 = vmatprep.mubr.bf16.mxu0 0
    %1956 = vmatmul.mubr.bf16.gmra.mxu0 %v1166
    %v1957 = vpop.f32.mrf.mxu0
    %v1958 = vadd.f32 %v285, %v1957
    %v1959 = vpop.f32.mrf.mxu0
    %v1960 = vpop.f32.mrf.mxu0
    %v1961 = vadd.f32 %v285, %v1960
    %v1962 = vpop.f32.mrf.mxu0
    %1963 = vmatprep.mubr.bf16.mxu0 0
    %1964 = vmatmul.mubr.bf16.gmra.mxu0 %v1169
    %v1965 = vpop.f32.mrf.mxu0
    %v1966 = vadd.f32 %v285, %v1965
    %v1967 = vpop.f32.mrf.mxu0
    %v1968 = vpop.f32.mrf.mxu0
    %v1969 = vadd.f32 %v285, %v1968
    %v1970 = vpop.f32.mrf.mxu0
    %1971 = vmatprep.mubr.bf16.mxu0 0
    %1972 = vmatmul.mubr.bf16.gmra.mxu0 %v1172
    %v1973 = vpop.f32.mrf.mxu0
    %v1974 = vadd.f32 %v285, %v1973
    %v1975 = vpop.f32.mrf.mxu0
    %v1976 = vpop.f32.mrf.mxu0
    %v1977 = vadd.f32 %v285, %v1976
    %v1978 = vpop.f32.mrf.mxu0
    %1979 = vmatprep.mubr.bf16.mxu0 0
    %1980 = vmatmul.mubr.bf16.gmra.mxu0 %v1175
    %v1981 = vpop.f32.mrf.mxu0
    %v1982 = vadd.f32 %v285, %v1981
    %v1983 = vpop.f32.mrf.mxu0
    %v1984 = vpop.f32.mrf.mxu0
    %v1985 = vadd.f32 %v285, %v1984
    %v1986 = vpop.f32.mrf.mxu0
    %1987 = vmatprep.mubr.bf16.mxu0 0
    %1988 = vmatmul.mubr.bf16.gmra.mxu0 %v1178
    %v1989 = vpop.f32.mrf.mxu0
    %v1990 = vadd.f32 %v285, %v1989
    %v1991 = vpop.f32.mrf.mxu0
    %v1992 = vpop.f32.mrf.mxu0
    %v1993 = vadd.f32 %v285, %v1992
    %v1994 = vpop.f32.mrf.mxu0
    %1995 = vmatprep.mubr.bf16.mxu0 0
    %1996 = vmatmul.mubr.bf16.gmra.mxu0 %v1181
    %v1997 = vpop.f32.mrf.mxu0
    %v1998 = vadd.f32 %v285, %v1997
    %v1999 = vpop.f32.mrf.mxu0
    %v2000 = vpop.f32.mrf.mxu0
    %v2001 = vadd.f32 %v285, %v2000
    %v2002 = vpop.f32.mrf.mxu0
    %2003 = vmatprep.mubr.bf16.mxu0 0
    %2004 = vmatmul.mubr.bf16.gmra.mxu0 %v1184
    %v2005 = vpop.f32.mrf.mxu0
    %v2006 = vadd.f32 %v285, %v2005
    %v2007 = vpop.f32.mrf.mxu0
    %v2008 = vpop.f32.mrf.mxu0
    %v2009 = vadd.f32 %v285, %v2008
    %v2010 = vpop.f32.mrf.mxu0
    %2011 = vmatprep.mubr.bf16.mxu0 0
    %2012 = vmatmul.mubr.bf16.gmra.mxu0 %v1187
    %v2013 = vpop.f32.mrf.mxu0
    %v2014 = vadd.f32 %v285, %v2013
    %v2015 = vpop.f32.mrf.mxu0
    %v2016 = vpop.f32.mrf.mxu0
    %v2017 = vadd.f32 %v285, %v2016
    %v2018 = vpop.f32.mrf.mxu0
    %2019 = vmatprep.mubr.bf16.mxu0 0
    %2020 = vmatmul.mubr.bf16.gmra.mxu0 %v1190
    %v2021 = vpop.f32.mrf.mxu0
    %v2022 = vadd.f32 %v285, %v2021
    %v2023 = vpop.f32.mrf.mxu0
    %v2024 = vpop.f32.mrf.mxu0
    %v2025 = vadd.f32 %v285, %v2024
    %v2026 = vpop.f32.mrf.mxu0
    %2027 = vmatprep.mubr.bf16.mxu0 0
    %2028 = vmatmul.mubr.bf16.gmra.mxu0 %v1193
    %v2029 = vpop.f32.mrf.mxu0
    %v2030 = vadd.f32 %v285, %v2029
    %v2031 = vpop.f32.mrf.mxu0
    %v2032 = vpop.f32.mrf.mxu0
    %v2033 = vadd.f32 %v285, %v2032
    %v2034 = vpop.f32.mrf.mxu0
    %2035 = vmatprep.mubr.bf16.mxu0 0
    %2036 = vmatmul.mubr.bf16.gmra.mxu0 %v1196
    %v2037 = vpop.f32.mrf.mxu0
    %v2038 = vadd.f32 %v285, %v2037
    %v2039 = vpop.f32.mrf.mxu0
    %v2040 = vpop.f32.mrf.mxu0
    %v2041 = vadd.f32 %v285, %v2040
    %v2042 = vpop.f32.mrf.mxu0
    %2043 = vmatprep.mubr.bf16.mxu0 0
    %2044 = vmatmul.mubr.bf16.gmra.mxu0 %v1199
    %v2045 = vpop.f32.mrf.mxu0
    %v2046 = vadd.f32 %v285, %v2045
    %v2047 = vpop.f32.mrf.mxu0
    %v2048 = vpop.f32.mrf.mxu0
    %v2049 = vadd.f32 %v285, %v2048
    %v2050 = vpop.f32.mrf.mxu0
    %2051 = vmatprep.mubr.bf16.mxu0 0
    %2052 = vmatmul.mubr.bf16.gmra.mxu0 %v1202
    %v2053 = vpop.f32.mrf.mxu0
    %v2054 = vadd.f32 %v285, %v2053
    %v2055 = vpop.f32.mrf.mxu0
    %v2056 = vpop.f32.mrf.mxu0
    %v2057 = vadd.f32 %v285, %v2056
    %v2058 = vpop.f32.mrf.mxu0
    %2059 = vmatprep.mubr.bf16.mxu0 0
    %2060 = vmatmul.mubr.bf16.gmra.mxu0 %v1205
    %v2061 = vpop.f32.mrf.mxu0
    %v2062 = vadd.f32 %v285, %v2061
    %v2063 = vpop.f32.mrf.mxu0
    %v2064 = vpop.f32.mrf.mxu0
    %v2065 = vadd.f32 %v285, %v2064
    %v2066 = vpop.f32.mrf.mxu0
    %2067 = vmatprep.mubr.bf16.mxu0 0
    %2068 = vmatmul.mubr.bf16.gmra.mxu0 %v1208
    %v2069 = vpop.f32.mrf.mxu0
    %v2070 = vadd.f32 %v285, %v2069
    %v2071 = vpop.f32.mrf.mxu0
    %v2072 = vpop.f32.mrf.mxu0
    %v2073 = vadd.f32 %v285, %v2072
    %v2074 = vpop.f32.mrf.mxu0
    %2075 = vmatprep.mubr.bf16.mxu0 0
    %2076 = vmatmul.mubr.bf16.gmra.mxu0 %v1211
    %v2077 = vpop.f32.mrf.mxu0
    %v2078 = vadd.f32 %v285, %v2077
    %v2079 = vpop.f32.mrf.mxu0
    %v2080 = vpop.f32.mrf.mxu0
    %v2081 = vadd.f32 %v285, %v2080
    %v2082 = vpop.f32.mrf.mxu0
    %2083 = vmatprep.mubr.bf16.mxu0 0
    %2084 = vmatmul.mubr.bf16.gmra.mxu0 %v1214
    %v2085 = vpop.f32.mrf.mxu0
    %v2086 = vadd.f32 %v285, %v2085
    %v2087 = vpop.f32.mrf.mxu0
    %v2088 = vpop.f32.mrf.mxu0
    %v2089 = vadd.f32 %v285, %v2088
    %v2090 = vpop.f32.mrf.mxu0
    %2091 = vmatprep.mubr.bf16.mxu0 0
    %2092 = vmatmul.mubr.bf16.gmra.mxu0 %v1217
    %v2093 = vpop.f32.mrf.mxu0
    %v2094 = vadd.f32 %v285, %v2093
    %v2095 = vpop.f32.mrf.mxu0
    %v2096 = vpop.f32.mrf.mxu0
    %v2097 = vadd.f32 %v285, %v2096
    %v2098 = vpop.f32.mrf.mxu0
    %2099 = vmatprep.mubr.bf16.mxu0 0
    %2100 = vmatmul.mubr.bf16.gmra.mxu0 %v1220
    %v2101 = vpop.f32.mrf.mxu0
    %v2102 = vadd.f32 %v285, %v2101
    %v2103 = vpop.f32.mrf.mxu0
    %v2104 = vpop.f32.mrf.mxu0
    %v2105 = vadd.f32 %v285, %v2104
    %v2106 = vpop.f32.mrf.mxu0
    %2107 = vmatprep.mubr.bf16.mxu0 0
    %2108 = vmatmul.mubr.bf16.gmra.mxu0 %v1223
    %v2109 = vpop.f32.mrf.mxu0
    %v2110 = vadd.f32 %v285, %v2109
    %v2111 = vpop.f32.mrf.mxu0
    %v2112 = vpop.f32.mrf.mxu0
    %v2113 = vadd.f32 %v285, %v2112
    %v2114 = vpop.f32.mrf.mxu0
    %2115 = vmatprep.mubr.bf16.mxu0 0
    %2116 = vmatmul.mubr.bf16.gmra.mxu0 %v1226
    %v2117 = vpop.f32.mrf.mxu0
    %v2118 = vadd.f32 %v285, %v2117
    %v2119 = vpop.f32.mrf.mxu0
    %v2120 = vpop.f32.mrf.mxu0
    %v2121 = vadd.f32 %v285, %v2120
    %v2122 = vpop.f32.mrf.mxu0
    %2123 = vmatprep.mubr.bf16.mxu0 0
    %2124 = vmatmul.mubr.bf16.gmra.mxu0 %v1229
    %v2125 = vpop.f32.mrf.mxu0
    %v2126 = vadd.f32 %v285, %v2125
    %v2127 = vpop.f32.mrf.mxu0
    %v2128 = vpop.f32.mrf.mxu0
    %v2129 = vadd.f32 %v285, %v2128
    %v2130 = vpop.f32.mrf.mxu0
    %2131 = vmatprep.mubr.bf16.mxu0 0
    %2132 = vmatmul.mubr.bf16.gmra.mxu0 %v1232
    %v2133 = vpop.f32.mrf.mxu0
    %v2134 = vadd.f32 %v285, %v2133
    %v2135 = vpop.f32.mrf.mxu0
    %v2136 = vpop.f32.mrf.mxu0
    %v2137 = vadd.f32 %v285, %v2136
    %v2138 = vpop.f32.mrf.mxu0
    %2139 = vmatprep.mubr.bf16.mxu0 0
    %2140 = vmatmul.mubr.bf16.gmra.mxu0 %v1235
    %v2141 = vpop.f32.mrf.mxu0
    %v2142 = vadd.f32 %v285, %v2141
    %v2143 = vpop.f32.mrf.mxu0
    %v2144 = vpop.f32.mrf.mxu0
    %v2145 = vadd.f32 %v285, %v2144
    %v2146 = vpop.f32.mrf.mxu0
    %2147 = vmatprep.mubr.bf16.mxu0 0
    %2148 = vmatmul.mubr.bf16.gmra.mxu0 %v1238
    %v2149 = vpop.f32.mrf.mxu0
    %v2150 = vadd.f32 %v285, %v2149
    %v2151 = vpop.f32.mrf.mxu0
    %v2152 = vpop.f32.mrf.mxu0
    %v2153 = vadd.f32 %v285, %v2152
    %v2154 = vpop.f32.mrf.mxu0
    %2155 = vmatprep.mubr.bf16.mxu0 0
    %2156 = vmatmul.mubr.bf16.gmra.mxu0 %v1241
    %v2157 = vpop.f32.mrf.mxu0
    %v2158 = vadd.f32 %v285, %v2157
    %v2159 = vpop.f32.mrf.mxu0
    %v2160 = vpop.f32.mrf.mxu0
    %v2161 = vadd.f32 %v285, %v2160
    %v2162 = vpop.f32.mrf.mxu0
    %2163 = vmatprep.mubr.bf16.mxu0 0
    %2164 = vmatmul.mubr.bf16.gmra.mxu0 %v1244
    %v2165 = vpop.f32.mrf.mxu0
    %v2166 = vadd.f32 %v285, %v2165
    %v2167 = vpop.f32.mrf.mxu0
    %v2168 = vpop.f32.mrf.mxu0
    %v2169 = vadd.f32 %v285, %v2168
    %v2170 = vpop.f32.mrf.mxu0
    %2171 = vmatprep.mubr.bf16.mxu0 0
    %2172 = vmatmul.mubr.bf16.gmra.mxu0 %v1247
    %v2173 = vpop.f32.mrf.mxu0
    %v2174 = vadd.f32 %v285, %v2173
    %v2175 = vpop.f32.mrf.mxu0
    %v2176 = vpop.f32.mrf.mxu0
    %v2177 = vadd.f32 %v285, %v2176
    %v2178 = vpop.f32.mrf.mxu0
    %2179 = vmatprep.mubr.bf16.mxu0 0
    %2180 = vmatmul.mubr.bf16.gmra.mxu0 %v1250
    %v2181 = vpop.f32.mrf.mxu0
    %v2182 = vadd.f32 %v285, %v2181
    %v2183 = vpop.f32.mrf.mxu0
    %v2184 = vpop.f32.mrf.mxu0
    %v2185 = vadd.f32 %v285, %v2184
    %v2186 = vpop.f32.mrf.mxu0
    %2187 = vmatprep.mubr.bf16.mxu0 0
    %2188 = vmatmul.mubr.bf16.gmra.mxu0 %v1253
    %v2189 = vpop.f32.mrf.mxu0
    %v2190 = vadd.f32 %v285, %v2189
    %v2191 = vpop.f32.mrf.mxu0
    %v2192 = vpop.f32.mrf.mxu0
    %v2193 = vadd.f32 %v285, %v2192
    %v2194 = vpop.f32.mrf.mxu0
    %2195 = vmatprep.mubr.bf16.mxu0 0
    %2196 = vmatmul.mubr.bf16.gmra.mxu0 %v1256
    %v2197 = vpop.f32.mrf.mxu0
    %v2198 = vadd.f32 %v285, %v2197
    %v2199 = vpop.f32.mrf.mxu0
    %v2200 = vpop.f32.mrf.mxu0
    %v2201 = vadd.f32 %v285, %v2200
    %v2202 = vpop.f32.mrf.mxu0
    %2203 = vmatprep.mubr.bf16.mxu0 0
    %2204 = vmatmul.mubr.bf16.gmra.mxu0 %v1259
    %v2205 = vpop.f32.mrf.mxu0
    %v2206 = vadd.f32 %v285, %v2205
    %v2207 = vpop.f32.mrf.mxu0
    %v2208 = vpop.f32.mrf.mxu0
    %v2209 = vadd.f32 %v285, %v2208
    %v2210 = vpop.f32.mrf.mxu0
    %2211 = vmatprep.mubr.bf16.mxu0 0
    %2212 = vmatmul.mubr.bf16.gmra.mxu0 %v1262
    %v2213 = vpop.f32.mrf.mxu0
    %v2214 = vadd.f32 %v285, %v2213
    %v2215 = vpop.f32.mrf.mxu0
    %v2216 = vpop.f32.mrf.mxu0
    %v2217 = vadd.f32 %v285, %v2216
    %v2218 = vpop.f32.mrf.mxu0
    %2219 = vmatprep.mubr.bf16.mxu0 0
    %2220 = vmatmul.mubr.bf16.gmra.mxu0 %v1265
    %v2221 = vpop.f32.mrf.mxu0
    %v2222 = vadd.f32 %v285, %v2221
    %v2223 = vpop.f32.mrf.mxu0
    %v2224 = vpop.f32.mrf.mxu0
    %v2225 = vadd.f32 %v285, %v2224
    %v2226 = vpop.f32.mrf.mxu0
    %2227 = vmatprep.mubr.bf16.mxu0 0
    %2228 = vmatmul.mubr.bf16.gmra.mxu0 %v1268
    %v2229 = vpop.f32.mrf.mxu0
    %v2230 = vadd.f32 %v285, %v2229
    %v2231 = vpop.f32.mrf.mxu0
    %v2232 = vpop.f32.mrf.mxu0
    %v2233 = vadd.f32 %v285, %v2232
    %v2234 = vpop.f32.mrf.mxu0
    %2235 = vmatprep.mubr.bf16.mxu0 0
    %2236 = vmatmul.mubr.bf16.gmra.mxu0 %v1271
    %v2237 = vpop.f32.mrf.mxu0
    %v2238 = vadd.f32 %v285, %v2237
    %v2239 = vpop.f32.mrf.mxu0
    %v2240 = vpop.f32.mrf.mxu0
    %v2241 = vadd.f32 %v285, %v2240
    %v2242 = vpop.f32.mrf.mxu0
    %2243 = vmatprep.mubr.bf16.mxu0 0
    %2244 = vmatmul.mubr.bf16.gmra.mxu0 %v1274
    %v2245 = vpop.f32.mrf.mxu0
    %v2246 = vadd.f32 %v285, %v2245
    %v2247 = vpop.f32.mrf.mxu0
    %v2248 = vpop.f32.mrf.mxu0
    %v2249 = vadd.f32 %v285, %v2248
    %v2250 = vpop.f32.mrf.mxu0
    %2251 = vmatprep.mubr.bf16.mxu0 0
    %2252 = vmatmul.mubr.bf16.gmra.mxu0 %v1277
    %v2253 = vpop.f32.mrf.mxu0
    %v2254 = vadd.f32 %v285, %v2253
    %v2255 = vpop.f32.mrf.mxu0
    %v2256 = vpop.f32.mrf.mxu0
    %v2257 = vadd.f32 %v285, %v2256
    %v2258 = vpop.f32.mrf.mxu0
    %2259 = vmatprep.mubr.bf16.mxu0 0
    %2260 = vmatmul.mubr.bf16.gmra.mxu0 %v1280
    %v2261 = vpop.f32.mrf.mxu0
    %v2262 = vadd.f32 %v285, %v2261
    %v2263 = vpop.f32.mrf.mxu0
    %v2264 = vpop.f32.mrf.mxu0
    %v2265 = vadd.f32 %v285, %v2264
    %v2266 = vpop.f32.mrf.mxu0
    %2267 = vmatprep.mubr.bf16.mxu0 0
    %2268 = vmatmul.mubr.bf16.gmra.mxu0 %v1283
    %v2269 = vpop.f32.mrf.mxu0
    %v2270 = vadd.f32 %v285, %v2269
    %v2271 = vpop.f32.mrf.mxu0
    %v2272 = vpop.f32.mrf.mxu0
    %v2273 = vadd.f32 %v285, %v2272
    %v2274 = vpop.f32.mrf.mxu0
    %2275 = vmatprep.mubr.bf16.mxu0 0
    %2276 = vmatmul.mubr.bf16.gmra.mxu0 %v1286
    %v2277 = vpop.f32.mrf.mxu0
    %v2278 = vadd.f32 %v285, %v2277
    %v2279 = vpop.f32.mrf.mxu0
    %v2280 = vpop.f32.mrf.mxu0
    %v2281 = vadd.f32 %v285, %v2280
    %v2282 = vpop.f32.mrf.mxu0
    %2283 = vmatprep.mubr.bf16.mxu0 0
    %2284 = vmatmul.mubr.bf16.gmra.mxu0 %v1289
    %v2285 = vpop.f32.mrf.mxu0
    %v2286 = vadd.f32 %v285, %v2285
    %v2287 = vpop.f32.mrf.mxu0
    %v2288 = vpop.f32.mrf.mxu0
    %v2289 = vadd.f32 %v285, %v2288
    %v2290 = vpop.f32.mrf.mxu0
    %2291 = vmatprep.mubr.bf16.mxu0 0
    %2292 = vmatmul.mubr.bf16.gmra.mxu0 %v1292
    %v2293 = vpop.f32.mrf.mxu0
    %v2294 = vadd.f32 %v285, %v2293
    %v2295 = vpop.f32.mrf.mxu0
    %v2296 = vpop.f32.mrf.mxu0
    %v2297 = vadd.f32 %v285, %v2296
    %v2298 = vpop.f32.mrf.mxu0
    %2299 = vmatprep.mubr.bf16.mxu0 0
    %2300 = vmatmul.mubr.bf16.gmra.mxu0 %v1295
    %v2301 = vpop.f32.mrf.mxu0
    %v2302 = vadd.f32 %v285, %v2301
    %v2303 = vpop.f32.mrf.mxu0
    %v2304 = vpop.f32.mrf.mxu0
    %v2305 = vadd.f32 %v285, %v2304
    %v2306 = vpop.f32.mrf.mxu0
    %2307 = vmatprep.mubr.bf16.mxu0 0
    %2308 = vmatmul.mubr.bf16.gmra.mxu0 %v1298
    %v2309 = vpop.f32.mrf.mxu0
    %v2310 = vadd.f32 %v285, %v2309
    %v2311 = vpop.f32.mrf.mxu0
    %v2312 = vpop.f32.mrf.mxu0
    %v2313 = vadd.f32 %v285, %v2312
    %v2314 = vpop.f32.mrf.mxu0
    %2315 = vmatprep.mubr.bf16.mxu0 0
    %2316 = vmatmul.mubr.bf16.gmra.mxu0 %v1301
    %v2317 = vpop.f32.mrf.mxu0
    %v2318 = vadd.f32 %v285, %v2317
    %v2319 = vpop.f32.mrf.mxu0
    %v2320 = vpop.f32.mrf.mxu0
    %v2321 = vadd.f32 %v285, %v2320
    %v2322 = vpop.f32.mrf.mxu0
    %2323 = vmatprep.mubr.bf16.mxu0 0
    %2324 = vmatmul.mubr.bf16.gmra.mxu0 %v1304
    %v2325 = vpop.f32.mrf.mxu0
    %v2326 = vadd.f32 %v285, %v2325
    %v2327 = vpop.f32.mrf.mxu0
    %v2328 = vpop.f32.mrf.mxu0
    %v2329 = vadd.f32 %v285, %v2328
    %v2330 = vpop.f32.mrf.mxu0
    %2331 = vmatprep.mubr.bf16.mxu0 0
    %2332 = vmatmul.mubr.bf16.gmra.mxu0 %v1307
    %v2333 = vpop.f32.mrf.mxu0
    %v2334 = vadd.f32 %v285, %v2333
    %v2335 = vpop.f32.mrf.mxu0
    %v2336 = vpop.f32.mrf.mxu0
    %v2337 = vadd.f32 %v285, %v2336
    %v2338 = vpop.f32.mrf.mxu0
    %2339 = vmatprep.mubr.bf16.mxu0 0
    %2340 = vmatmul.mubr.bf16.gmra.mxu0 %v1310
    %v2341 = vpop.f32.mrf.mxu0
    %v2342 = vadd.f32 %v285, %v2341
    %v2343 = vpop.f32.mrf.mxu0
    %v2344 = vpop.f32.mrf.mxu0
    %v2345 = vadd.f32 %v285, %v2344
    %v2346 = vpop.f32.mrf.mxu0
    %2347 = vmatprep.mubr.bf16.mxu0 0
    %2348 = vmatmul.mubr.bf16.gmra.mxu0 %v1313
    %v2349 = vpop.f32.mrf.mxu0
    %v2350 = vadd.f32 %v285, %v2349
    %v2351 = vpop.f32.mrf.mxu0
    %v2352 = vpop.f32.mrf.mxu0
    %v2353 = vadd.f32 %v285, %v2352
    %v2354 = vpop.f32.mrf.mxu0
    %2355 = vmatprep.mubr.bf16.mxu0 0
    %2356 = vmatmul.mubr.bf16.gmra.mxu0 %v1316
    %v2357 = vpop.f32.mrf.mxu0
    %v2358 = vadd.f32 %v285, %v2357
    %v2359 = vpop.f32.mrf.mxu0
    %v2360 = vpop.f32.mrf.mxu0
    %v2361 = vadd.f32 %v285, %v2360
    %v2362 = vpop.f32.mrf.mxu0
    %2363 = vmatprep.mubr.bf16.mxu0 0
    %2364 = vmatmul.mubr.bf16.gmra.mxu0 %v1319
    %v2365 = vpop.f32.mrf.mxu0
    %v2366 = vadd.f32 %v285, %v2365
    %v2367 = vpop.f32.mrf.mxu0
    %v2368 = vpop.f32.mrf.mxu0
    %v2369 = vadd.f32 %v285, %v2368
    %v2370 = vpop.f32.mrf.mxu0
    %2371 = vmatprep.mubr.bf16.mxu0 0
    %2372 = vmatmul.mubr.bf16.gmra.mxu0 %v1322
    %v2373 = vpop.f32.mrf.mxu0
    %v2374 = vadd.f32 %v285, %v2373
    %v2375 = vpop.f32.mrf.mxu0
    %v2376 = vpop.f32.mrf.mxu0
    %v2377 = vadd.f32 %v285, %v2376
    %v2378 = vpop.f32.mrf.mxu0
    %2379 = vmatprep.mubr.bf16.mxu0 0
    %2380 = vmatmul.mubr.bf16.gmra.mxu0 %v1325
    %v2381 = vpop.f32.mrf.mxu0
    %v2382 = vadd.f32 %v285, %v2381
    %v2383 = vpop.f32.mrf.mxu0
    %v2384 = vpop.f32.mrf.mxu0
    %v2385 = vadd.f32 %v285, %v2384
    %v2386 = vpop.f32.mrf.mxu0
    %2387 = vdwg.mxu0
    %v2388 = vmax.f32 %v1366, 0.0
    %v2389 = vmax.f32 %v1369, 0.0
    %v2390 = vmax.f32 %v1374, 0.0
    %v2391 = vmax.f32 %v1377, 0.0
    %v2392 = vmax.f32 %v1382, 0.0
    %v2393 = vmax.f32 %v1385, 0.0
    %v2394 = vmax.f32 %v1390, 0.0
    %v2395 = vmax.f32 %v1393, 0.0
    %v2396 = vmax.f32 %v1398, 0.0
    %v2397 = vmax.f32 %v1401, 0.0
    %v2398 = vmax.f32 %v1406, 0.0
    %v2399 = vmax.f32 %v1409, 0.0
    %v2400 = vmax.f32 %v1414, 0.0
    %v2401 = vmax.f32 %v1417, 0.0
    %v2402 = vmax.f32 %v1422, 0.0
    %v2403 = vmax.f32 %v1425, 0.0
    %v2404 = vmax.f32 %v1430, 0.0
    %v2405 = vmax.f32 %v1433, 0.0
    %v2406 = vmax.f32 %v1438, 0.0
    %v2407 = vmax.f32 %v1441, 0.0
    %v2408 = vmax.f32 %v1446, 0.0
    %v2409 = vmax.f32 %v1449, 0.0
    %v2410 = vmax.f32 %v1454, 0.0
    %v2411 = vmax.f32 %v1457, 0.0
    %v2412 = vmax.f32 %v1462, 0.0
    %v2413 = vmax.f32 %v1465, 0.0
    %v2414 = vmax.f32 %v1470, 0.0
    %v2415 = vmax.f32 %v1473, 0.0
    %v2416 = vmax.f32 %v1478, 0.0
    %v2417 = vmax.f32 %v1481, 0.0
    %v2418 = vmax.f32 %v1486, 0.0
    %v2419 = vmax.f32 %v1489, 0.0
    %v2420 = vmax.f32 %v1494, 0.0
    %v2421 = vmax.f32 %v1497, 0.0
    %v2422 = vmax.f32 %v1502, 0.0
    %v2423 = vmax.f32 %v1505, 0.0
    %v2424 = vmax.f32 %v1510, 0.0
    %v2425 = vmax.f32 %v1513, 0.0
    %v2426 = vmax.f32 %v1518, 0.0
    %v2427 = vmax.f32 %v1521, 0.0
    %v2428 = vmax.f32 %v1526, 0.0
    %v2429 = vmax.f32 %v1529, 0.0
    %v2430 = vmax.f32 %v1534, 0.0
    %v2431 = vmax.f32 %v1537, 0.0
    %v2432 = vmax.f32 %v1542, 0.0
    %v2433 = vmax.f32 %v1545, 0.0
    %v2434 = vmax.f32 %v1550, 0.0
    %v2435 = vmax.f32 %v1553, 0.0
    %v2436 = vmax.f32 %v1558, 0.0
    %v2437 = vmax.f32 %v1561, 0.0
    %v2438 = vmax.f32 %v1566, 0.0
    %v2439 = vmax.f32 %v1569, 0.0
    %v2440 = vmax.f32 %v1574, 0.0
    %v2441 = vmax.f32 %v1577, 0.0
    %v2442 = vmax.f32 %v1582, 0.0
    %v2443 = vmax.f32 %v1585, 0.0
    %v2444 = vmax.f32 %v1590, 0.0
    %v2445 = vmax.f32 %v1593, 0.0
    %v2446 = vmax.f32 %v1598, 0.0
    %v2447 = vmax.f32 %v1601, 0.0
    %v2448 = vmax.f32 %v1606, 0.0
    %v2449 = vmax.f32 %v1609, 0.0
    %v2450 = vmax.f32 %v1614, 0.0
    %v2451 = vmax.f32 %v1617, 0.0
    %v2452 = vmax.f32 %v1622, 0.0
    %v2453 = vmax.f32 %v1625, 0.0
    %v2454 = vmax.f32 %v1630, 0.0
    %v2455 = vmax.f32 %v1633, 0.0
    %v2456 = vmax.f32 %v1638, 0.0
    %v2457 = vmax.f32 %v1641, 0.0
    %v2458 = vmax.f32 %v1646, 0.0
    %v2459 = vmax.f32 %v1649, 0.0
    %v2460 = vmax.f32 %v1654, 0.0
    %v2461 = vmax.f32 %v1657, 0.0
    %v2462 = vmax.f32 %v1662, 0.0
    %v2463 = vmax.f32 %v1665, 0.0
    %v2464 = vmax.f32 %v1670, 0.0
    %v2465 = vmax.f32 %v1673, 0.0
    %v2466 = vmax.f32 %v1678, 0.0
    %v2467 = vmax.f32 %v1681, 0.0
    %v2468 = vmax.f32 %v1686, 0.0
    %v2469 = vmax.f32 %v1689, 0.0
    %v2470 = vmax.f32 %v1694, 0.0
    %v2471 = vmax.f32 %v1697, 0.0
    %v2472 = vmax.f32 %v1702, 0.0
    %v2473 = vmax.f32 %v1705, 0.0
    %v2474 = vmax.f32 %v1710, 0.0
    %v2475 = vmax.f32 %v1713, 0.0
    %v2476 = vmax.f32 %v1718, 0.0
    %v2477 = vmax.f32 %v1721, 0.0
    %v2478 = vmax.f32 %v1726, 0.0
    %v2479 = vmax.f32 %v1729, 0.0
    %v2480 = vmax.f32 %v1734, 0.0
    %v2481 = vmax.f32 %v1737, 0.0
    %v2482 = vmax.f32 %v1742, 0.0
    %v2483 = vmax.f32 %v1745, 0.0
    %v2484 = vmax.f32 %v1750, 0.0
    %v2485 = vmax.f32 %v1753, 0.0
    %v2486 = vmax.f32 %v1758, 0.0
    %v2487 = vmax.f32 %v1761, 0.0
    %v2488 = vmax.f32 %v1766, 0.0
    %v2489 = vmax.f32 %v1769, 0.0
    %v2490 = vmax.f32 %v1774, 0.0
    %v2491 = vmax.f32 %v1777, 0.0
    %v2492 = vmax.f32 %v1782, 0.0
    %v2493 = vmax.f32 %v1785, 0.0
    %v2494 = vmax.f32 %v1790, 0.0
    %v2495 = vmax.f32 %v1793, 0.0
    %v2496 = vmax.f32 %v1798, 0.0
    %v2497 = vmax.f32 %v1801, 0.0
    %v2498 = vmax.f32 %v1806, 0.0
    %v2499 = vmax.f32 %v1809, 0.0
    %v2500 = vmax.f32 %v1814, 0.0
    %v2501 = vmax.f32 %v1817, 0.0
    %v2502 = vmax.f32 %v1822, 0.0
    %v2503 = vmax.f32 %v1825, 0.0
    %v2504 = vmax.f32 %v1830, 0.0
    %v2505 = vmax.f32 %v1833, 0.0
    %v2506 = vmax.f32 %v1838, 0.0
    %v2507 = vmax.f32 %v1841, 0.0
    %v2508 = vmax.f32 %v1846, 0.0
    %v2509 = vmax.f32 %v1849, 0.0
    %v2510 = vmax.f32 %v1854, 0.0
    %v2511 = vmax.f32 %v1857, 0.0
    %v2512 = vmax.f32 %v1862, 0.0
    %v2513 = vmax.f32 %v1865, 0.0
    %v2514 = vmax.f32 %v1870, 0.0
    %v2515 = vmax.f32 %v1873, 0.0
    %v2516 = vmax.f32 %v1878, 0.0
    %v2517 = vmax.f32 %v1881, 0.0
    %v2518 = vmax.f32 %v1886, 0.0
    %v2519 = vmax.f32 %v1889, 0.0
    %v2520 = vmax.f32 %v1894, 0.0
    %v2521 = vmax.f32 %v1897, 0.0
    %v2522 = vmax.f32 %v1902, 0.0
    %v2523 = vmax.f32 %v1905, 0.0
    %v2524 = vmax.f32 %v1910, 0.0
    %v2525 = vmax.f32 %v1913, 0.0
    %v2526 = vmax.f32 %v1918, 0.0
    %v2527 = vmax.f32 %v1921, 0.0
    %v2528 = vmax.f32 %v1926, 0.0
    %v2529 = vmax.f32 %v1929, 0.0
    %v2530 = vmax.f32 %v1934, 0.0
    %v2531 = vmax.f32 %v1937, 0.0
    %v2532 = vmax.f32 %v1942, 0.0
    %v2533 = vmax.f32 %v1945, 0.0
    %v2534 = vmax.f32 %v1950, 0.0
    %v2535 = vmax.f32 %v1953, 0.0
    %v2536 = vmax.f32 %v1958, 0.0
    %v2537 = vmax.f32 %v1961, 0.0
    %v2538 = vmax.f32 %v1966, 0.0
    %v2539 = vmax.f32 %v1969, 0.0
    %v2540 = vmax.f32 %v1974, 0.0
    %v2541 = vmax.f32 %v1977, 0.0
    %v2542 = vmax.f32 %v1982, 0.0
    %v2543 = vmax.f32 %v1985, 0.0
    %v2544 = vmax.f32 %v1990, 0.0
    %v2545 = vmax.f32 %v1993, 0.0
    %v2546 = vmax.f32 %v1998, 0.0
    %v2547 = vmax.f32 %v2001, 0.0
    %v2548 = vmax.f32 %v2006, 0.0
    %v2549 = vmax.f32 %v2009, 0.0
    %v2550 = vmax.f32 %v2014, 0.0
    %v2551 = vmax.f32 %v2017, 0.0
    %v2552 = vmax.f32 %v2022, 0.0
    %v2553 = vmax.f32 %v2025, 0.0
    %v2554 = vmax.f32 %v2030, 0.0
    %v2555 = vmax.f32 %v2033, 0.0
    %v2556 = vmax.f32 %v2038, 0.0
    %v2557 = vmax.f32 %v2041, 0.0
    %v2558 = vmax.f32 %v2046, 0.0
    %v2559 = vmax.f32 %v2049, 0.0
    %v2560 = vmax.f32 %v2054, 0.0
    %v2561 = vmax.f32 %v2057, 0.0
    %v2562 = vmax.f32 %v2062, 0.0
    %v2563 = vmax.f32 %v2065, 0.0
    %v2564 = vmax.f32 %v2070, 0.0
    %v2565 = vmax.f32 %v2073, 0.0
    %v2566 = vmax.f32 %v2078, 0.0
    %v2567 = vmax.f32 %v2081, 0.0
    %v2568 = vmax.f32 %v2086, 0.0
    %v2569 = vmax.f32 %v2089, 0.0
    %v2570 = vmax.f32 %v2094, 0.0
    %v2571 = vmax.f32 %v2097, 0.0
    %v2572 = vmax.f32 %v2102, 0.0
    %v2573 = vmax.f32 %v2105, 0.0
    %v2574 = vmax.f32 %v2110, 0.0
    %v2575 = vmax.f32 %v2113, 0.0
    %v2576 = vmax.f32 %v2118, 0.0
    %v2577 = vmax.f32 %v2121, 0.0
    %v2578 = vmax.f32 %v2126, 0.0
    %v2579 = vmax.f32 %v2129, 0.0
    %v2580 = vmax.f32 %v2134, 0.0
    %v2581 = vmax.f32 %v2137, 0.0
    %v2582 = vmax.f32 %v2142, 0.0
    %v2583 = vmax.f32 %v2145, 0.0
    %v2584 = vmax.f32 %v2150, 0.0
    %v2585 = vmax.f32 %v2153, 0.0
    %v2586 = vmax.f32 %v2158, 0.0
    %v2587 = vmax.f32 %v2161, 0.0
    %v2588 = vmax.f32 %v2166, 0.0
    %v2589 = vmax.f32 %v2169, 0.0
    %v2590 = vmax.f32 %v2174, 0.0
    %v2591 = vmax.f32 %v2177, 0.0
    %v2592 = vmax.f32 %v2182, 0.0
    %v2593 = vmax.f32 %v2185, 0.0
    %v2594 = vmax.f32 %v2190, 0.0
    %v2595 = vmax.f32 %v2193, 0.0
    %v2596 = vmax.f32 %v2198, 0.0
    %v2597 = vmax.f32 %v2201, 0.0
    %v2598 = vmax.f32 %v2206, 0.0
    %v2599 = vmax.f32 %v2209, 0.0
    %v2600 = vmax.f32 %v2214, 0.0
    %v2601 = vmax.f32 %v2217, 0.0
    %v2602 = vmax.f32 %v2222, 0.0
    %v2603 = vmax.f32 %v2225, 0.0
    %v2604 = vmax.f32 %v2230, 0.0
    %v2605 = vmax.f32 %v2233, 0.0
    %v2606 = vmax.f32 %v2238, 0.0
    %v2607 = vmax.f32 %v2241, 0.0
    %v2608 = vmax.f32 %v2246, 0.0
    %v2609 = vmax.f32 %v2249, 0.0
    %v2610 = vmax.f32 %v2254, 0.0
    %v2611 = vmax.f32 %v2257, 0.0
    %v2612 = vmax.f32 %v2262, 0.0
    %v2613 = vmax.f32 %v2265, 0.0
    %v2614 = vmax.f32 %v2270, 0.0
    %v2615 = vmax.f32 %v2273, 0.0
    %v2616 = vmax.f32 %v2278, 0.0
    %v2617 = vmax.f32 %v2281, 0.0
    %v2618 = vmax.f32 %v2286, 0.0
    %v2619 = vmax.f32 %v2289, 0.0
    %v2620 = vmax.f32 %v2294, 0.0
    %v2621 = vmax.f32 %v2297, 0.0
    %v2622 = vmax.f32 %v2302, 0.0
    %v2623 = vmax.f32 %v2305, 0.0
    %v2624 = vmax.f32 %v2310, 0.0
    %v2625 = vmax.f32 %v2313, 0.0
    %v2626 = vmax.f32 %v2318, 0.0
    %v2627 = vmax.f32 %v2321, 0.0
    %v2628 = vmax.f32 %v2326, 0.0
    %v2629 = vmax.f32 %v2329, 0.0
    %v2630 = vmax.f32 %v2334, 0.0
    %v2631 = vmax.f32 %v2337, 0.0
    %v2632 = vmax.f32 %v2342, 0.0
    %v2633 = vmax.f32 %v2345, 0.0
    %v2634 = vmax.f32 %v2350, 0.0
    %v2635 = vmax.f32 %v2353, 0.0
    %v2636 = vmax.f32 %v2358, 0.0
    %v2637 = vmax.f32 %v2361, 0.0
    %v2638 = vmax.f32 %v2366, 0.0
    %v2639 = vmax.f32 %v2369, 0.0
    %v2640 = vmax.f32 %v2374, 0.0
    %v2641 = vmax.f32 %v2377, 0.0
    %v2642 = vmax.f32 %v2382, 0.0
    %v2643 = vmax.f32 %v2385, 0.0
    %v2644 = vld [vmem:[%s3] sm:$0xff]
    %v2645 = vld [vmem:[%s3 + $0x8] sm:$0xff]
    %v2646 = vld [vmem:[%s3 + $0x10] sm:$0xff]
    %v2647 = vld [vmem:[%s3 + $0x18] sm:$0xff]
    %v2648 = vld [vmem:[%s3 + $0x20] sm:$0xff]
    %v2649 = vld [vmem:[%s3 + $0x28] sm:$0xff]
    %v2650 = vld [vmem:[%s3 + $0x30] sm:$0xff]
    %v2651 = vld [vmem:[%s3 + $0x38] sm:$0xff]
    %v2652 = vpack.c.bf16 %v2389, %v2388
    %v2653 = vpack.c.bf16 %v2391, %v2390
    %v2654 = vpack.c.bf16 %v2393, %v2392
    %v2655 = vpack.c.bf16 %v2395, %v2394
    %v2656 = vpack.c.bf16 %v2397, %v2396
    %v2657 = vpack.c.bf16 %v2399, %v2398
    %v2658 = vpack.c.bf16 %v2401, %v2400
    %v2659 = vpack.c.bf16 %v2403, %v2402
    %v2660 = vpack.c.bf16 %v2405, %v2404
    %v2661 = vpack.c.bf16 %v2407, %v2406
    %v2662 = vpack.c.bf16 %v2409, %v2408
    %v2663 = vpack.c.bf16 %v2411, %v2410
    %v2664 = vpack.c.bf16 %v2413, %v2412
    %v2665 = vpack.c.bf16 %v2415, %v2414
    %v2666 = vpack.c.bf16 %v2417, %v2416
    %v2667 = vpack.c.bf16 %v2419, %v2418
    %v2668 = vpack.c.bf16 %v2421, %v2420
    %v2669 = vpack.c.bf16 %v2423, %v2422
    %v2670 = vpack.c.bf16 %v2425, %v2424
    %v2671 = vpack.c.bf16 %v2427, %v2426
    %v2672 = vpack.c.bf16 %v2429, %v2428
    %v2673 = vpack.c.bf16 %v2431, %v2430
    %v2674 = vpack.c.bf16 %v2433, %v2432
    %v2675 = vpack.c.bf16 %v2435, %v2434
    %v2676 = vpack.c.bf16 %v2437, %v2436
    %v2677 = vpack.c.bf16 %v2439, %v2438
    %v2678 = vpack.c.bf16 %v2441, %v2440
    %v2679 = vpack.c.bf16 %v2443, %v2442
    %v2680 = vpack.c.bf16 %v2445, %v2444
    %v2681 = vpack.c.bf16 %v2447, %v2446
    %v2682 = vpack.c.bf16 %v2449, %v2448
    %v2683 = vpack.c.bf16 %v2451, %v2450
    %v2684 = vpack.c.bf16 %v2453, %v2452
    %v2685 = vpack.c.bf16 %v2455, %v2454
    %v2686 = vpack.c.bf16 %v2457, %v2456
    %v2687 = vpack.c.bf16 %v2459, %v2458
    %v2688 = vpack.c.bf16 %v2461, %v2460
    %v2689 = vpack.c.bf16 %v2463, %v2462
    %v2690 = vpack.c.bf16 %v2465, %v2464
    %v2691 = vpack.c.bf16 %v2467, %v2466
    %v2692 = vpack.c.bf16 %v2469, %v2468
    %v2693 = vpack.c.bf16 %v2471, %v2470
    %v2694 = vpack.c.bf16 %v2473, %v2472
    %v2695 = vpack.c.bf16 %v2475, %v2474
    %v2696 = vpack.c.bf16 %v2477, %v2476
    %v2697 = vpack.c.bf16 %v2479, %v2478
    %v2698 = vpack.c.bf16 %v2481, %v2480
    %v2699 = vpack.c.bf16 %v2483, %v2482
    %v2700 = vpack.c.bf16 %v2485, %v2484
    %v2701 = vpack.c.bf16 %v2487, %v2486
    %v2702 = vpack.c.bf16 %v2489, %v2488
    %v2703 = vpack.c.bf16 %v2491, %v2490
    %v2704 = vpack.c.bf16 %v2493, %v2492
    %v2705 = vpack.c.bf16 %v2495, %v2494
    %v2706 = vpack.c.bf16 %v2497, %v2496
    %v2707 = vpack.c.bf16 %v2499, %v2498
    %v2708 = vpack.c.bf16 %v2501, %v2500
    %v2709 = vpack.c.bf16 %v2503, %v2502
    %v2710 = vpack.c.bf16 %v2505, %v2504
    %v2711 = vpack.c.bf16 %v2507, %v2506
    %v2712 = vpack.c.bf16 %v2509, %v2508
    %v2713 = vpack.c.bf16 %v2511, %v2510
    %v2714 = vpack.c.bf16 %v2513, %v2512
    %v2715 = vpack.c.bf16 %v2515, %v2514
    %v2716 = vpack.c.bf16 %v2517, %v2516
    %v2717 = vpack.c.bf16 %v2519, %v2518
    %v2718 = vpack.c.bf16 %v2521, %v2520
    %v2719 = vpack.c.bf16 %v2523, %v2522
    %v2720 = vpack.c.bf16 %v2525, %v2524
    %v2721 = vpack.c.bf16 %v2527, %v2526
    %v2722 = vpack.c.bf16 %v2529, %v2528
    %v2723 = vpack.c.bf16 %v2531, %v2530
    %v2724 = vpack.c.bf16 %v2533, %v2532
    %v2725 = vpack.c.bf16 %v2535, %v2534
    %v2726 = vpack.c.bf16 %v2537, %v2536
    %v2727 = vpack.c.bf16 %v2539, %v2538
    %v2728 = vpack.c.bf16 %v2541, %v2540
    %v2729 = vpack.c.bf16 %v2543, %v2542
    %v2730 = vpack.c.bf16 %v2545, %v2544
    %v2731 = vpack.c.bf16 %v2547, %v2546
    %v2732 = vpack.c.bf16 %v2549, %v2548
    %v2733 = vpack.c.bf16 %v2551, %v2550
    %v2734 = vpack.c.bf16 %v2553, %v2552
    %v2735 = vpack.c.bf16 %v2555, %v2554
    %v2736 = vpack.c.bf16 %v2557, %v2556
    %v2737 = vpack.c.bf16 %v2559, %v2558
    %v2738 = vpack.c.bf16 %v2561, %v2560
    %v2739 = vpack.c.bf16 %v2563, %v2562
    %v2740 = vpack.c.bf16 %v2565, %v2564
    %v2741 = vpack.c.bf16 %v2567, %v2566
    %v2742 = vpack.c.bf16 %v2569, %v2568
    %v2743 = vpack.c.bf16 %v2571, %v2570
    %v2744 = vpack.c.bf16 %v2573, %v2572
    %v2745 = vpack.c.bf16 %v2575, %v2574
    %v2746 = vpack.c.bf16 %v2577, %v2576
    %v2747 = vpack.c.bf16 %v2579, %v2578
    %v2748 = vpack.c.bf16 %v2581, %v2580
    %v2749 = vpack.c.bf16 %v2583, %v2582
    %v2750 = vpack.c.bf16 %v2585, %v2584
    %v2751 = vpack.c.bf16 %v2587, %v2586
    %v2752 = vpack.c.bf16 %v2589, %v2588
    %v2753 = vpack.c.bf16 %v2591, %v2590
    %v2754 = vpack.c.bf16 %v2593, %v2592
    %v2755 = vpack.c.bf16 %v2595, %v2594
    %v2756 = vpack.c.bf16 %v2597, %v2596
    %v2757 = vpack.c.bf16 %v2599, %v2598
    %v2758 = vpack.c.bf16 %v2601, %v2600
    %v2759 = vpack.c.bf16 %v2603, %v2602
    %v2760 = vpack.c.bf16 %v2605, %v2604
    %v2761 = vpack.c.bf16 %v2607, %v2606
    %v2762 = vpack.c.bf16 %v2609, %v2608
    %v2763 = vpack.c.bf16 %v2611, %v2610
    %v2764 = vpack.c.bf16 %v2613, %v2612
    %v2765 = vpack.c.bf16 %v2615, %v2614
    %v2766 = vpack.c.bf16 %v2617, %v2616
    %v2767 = vpack.c.bf16 %v2619, %v2618
    %v2768 = vpack.c.bf16 %v2621, %v2620
    %v2769 = vpack.c.bf16 %v2623, %v2622
    %v2770 = vpack.c.bf16 %v2625, %v2624
    %v2771 = vpack.c.bf16 %v2627, %v2626
    %v2772 = vpack.c.bf16 %v2629, %v2628
    %v2773 = vpack.c.bf16 %v2631, %v2630
    %v2774 = vpack.c.bf16 %v2633, %v2632
    %v2775 = vpack.c.bf16 %v2635, %v2634
    %v2776 = vpack.c.bf16 %v2637, %v2636
    %v2777 = vpack.c.bf16 %v2639, %v2638
    %v2778 = vpack.c.bf16 %v2641, %v2640
    %v2779 = vpack.c.bf16 %v2643, %v2642
    %v2788 = vunpack.c.l.b16 %v2644
    %v2789 = vunpack.c.h.b16 %v2644
    %v2790 = vunpack.c.l.b16 %v2645
    %v2791 = vunpack.c.h.b16 %v2645
    %v2792 = vunpack.c.l.b16 %v2646
    %v2793 = vunpack.c.h.b16 %v2646
    %v2794 = vunpack.c.l.b16 %v2647
    %v2795 = vunpack.c.h.b16 %v2647
    %v2796 = vunpack.c.l.b16 %v2648
    %v2797 = vunpack.c.h.b16 %v2648
    %v2798 = vunpack.c.l.b16 %v2649
    %v2799 = vunpack.c.h.b16 %v2649
    %v2800 = vunpack.c.l.b16 %v2650
    %v2801 = vunpack.c.h.b16 %v2650
    %v2802 = vunpack.c.l.b16 %v2651
    %v2803 = vunpack.c.h.b16 %v2651
    %v2804 = vpack.c.b16 %v2788, %v2788
    %v2805 = vpack.c.b16 %v2789, %v2789
    %v2806 = vpack.c.b16 %v2790, %v2790
    %v2807 = vpack.c.b16 %v2791, %v2791
    %v2808 = vpack.c.b16 %v2792, %v2792
    %v2809 = vpack.c.b16 %v2793, %v2793
    %v2810 = vpack.c.b16 %v2794, %v2794
    %v2811 = vpack.c.b16 %v2795, %v2795
    %v2812 = vpack.c.b16 %v2796, %v2796
    %v2813 = vpack.c.b16 %v2797, %v2797
    %v2814 = vpack.c.b16 %v2798, %v2798
    %v2815 = vpack.c.b16 %v2799, %v2799
    %v2816 = vpack.c.b16 %v2800, %v2800
    %v2817 = vpack.c.b16 %v2801, %v2801
    %v2818 = vpack.c.b16 %v2802, %v2802
    %v2819 = vpack.c.b16 %v2803, %v2803
    %2836 = vmatprep.subr.bf16.mxu0 0
    %2837 = vmatpush1.bf16.msra.mxu0 %v2659
    %2838 = vmatprep.subr.bf16.mxu0 0
    %2839 = vmatpush1.bf16.msra.mxu0 %v2658
    %2840 = vmatprep.subr.bf16.mxu0 0
    %2841 = vmatpush1.bf16.msra.mxu0 %v2657
    %2842 = vmatprep.subr.bf16.mxu0 0
    %2843 = vmatpush1.bf16.msra.mxu0 %v2656
    %2844 = vmatprep.subr.bf16.mxu0 0
    %2845 = vmatpush1.bf16.msra.mxu0 %v2655
    %2846 = vmatprep.subr.bf16.mxu0 0
    %2847 = vmatpush1.bf16.msra.mxu0 %v2654
    %2848 = vmatprep.subr.bf16.mxu0 0
    %2849 = vmatpush1.bf16.msra.mxu0 %v2653
    %2850 = vmatprep.subr.bf16.mxu0 0
    %2851 = vmatpush1.bf16.msra.mxu0 %v2652
    %2852 = vmatprep.subr.bf16.mxu0 0
    %2853 = vmatpush2.bf16.msra.mxu0 %v2667
    %2854 = vmatprep.subr.bf16.mxu0 0
    %2855 = vmatpush2.bf16.msra.mxu0 %v2666
    %2856 = vmatprep.subr.bf16.mxu0 0
    %2857 = vmatpush2.bf16.msra.mxu0 %v2665
    %2858 = vmatprep.subr.bf16.mxu0 0
    %2859 = vmatpush2.bf16.msra.mxu0 %v2664
    %2860 = vmatprep.subr.bf16.mxu0 0
    %2861 = vmatpush2.bf16.msra.mxu0 %v2663
    %2862 = vmatprep.subr.bf16.mxu0 0
    %2863 = vmatpush2.bf16.msra.mxu0 %v2662
    %2864 = vmatprep.subr.bf16.mxu0 0
    %2865 = vmatpush2.bf16.msra.mxu0 %v2661
    %2866 = vmatprep.subr.bf16.mxu0 0
    %2867 = vmatpush2.bf16.msra.mxu0 %v2660
    %2868 = vmatprep.mubr.bf16.mxu0 %v2805
    %2869 = vmatmul.mubr.bf16.gmra.mxu0 %v2804
    %v2870 = vpop.f32.mrf.mxu0
    %v2871 = vadd.f32 0.0, %v2870
    %v2872 = vpop.f32.mrf.mxu0
    %v2873 = vpop.f32.mrf.mxu0
    %v2874 = vpop.f32.mrf.mxu0
    %2875 = vdwg.mxu0
    %2876 = vmatprep.subr.bf16.mxu0 0
    %2877 = vmatpush1.bf16.msra.mxu0 %v2675
    %2878 = vmatprep.subr.bf16.mxu0 0
    %2879 = vmatpush1.bf16.msra.mxu0 %v2674
    %2880 = vmatprep.subr.bf16.mxu0 0
    %2881 = vmatpush1.bf16.msra.mxu0 %v2673
    %2882 = vmatprep.subr.bf16.mxu0 0
    %2883 = vmatpush1.bf16.msra.mxu0 %v2672
    %2884 = vmatprep.subr.bf16.mxu0 0
    %2885 = vmatpush1.bf16.msra.mxu0 %v2671
    %2886 = vmatprep.subr.bf16.mxu0 0
    %2887 = vmatpush1.bf16.msra.mxu0 %v2670
    %2888 = vmatprep.subr.bf16.mxu0 0
    %2889 = vmatpush1.bf16.msra.mxu0 %v2669
    %2890 = vmatprep.subr.bf16.mxu0 0
    %2891 = vmatpush1.bf16.msra.mxu0 %v2668
    %2892 = vmatprep.subr.bf16.mxu0 0
    %2893 = vmatpush2.bf16.msra.mxu0 %v2683
    %2894 = vmatprep.subr.bf16.mxu0 0
    %2895 = vmatpush2.bf16.msra.mxu0 %v2682
    %2896 = vmatprep.subr.bf16.mxu0 0
    %2897 = vmatpush2.bf16.msra.mxu0 %v2681
    %2898 = vmatprep.subr.bf16.mxu0 0
    %2899 = vmatpush2.bf16.msra.mxu0 %v2680
    %2900 = vmatprep.subr.bf16.mxu0 0
    %2901 = vmatpush2.bf16.msra.mxu0 %v2679
    %2902 = vmatprep.subr.bf16.mxu0 0
    %2903 = vmatpush2.bf16.msra.mxu0 %v2678
    %2904 = vmatprep.subr.bf16.mxu0 0
    %2905 = vmatpush2.bf16.msra.mxu0 %v2677
    %2906 = vmatprep.subr.bf16.mxu0 0
    %2907 = vmatpush2.bf16.msra.mxu0 %v2676
    %2908 = vmatprep.mubr.bf16.mxu0 %v2807
    %2909 = vmatmul.mubr.bf16.gmra.mxu0 %v2806
    %v2910 = vpop.f32.mrf.mxu0
    %v2911 = vadd.f32 %v2871, %v2910
    %v2912 = vpop.f32.mrf.mxu0
    %v2913 = vpop.f32.mrf.mxu0
    %v2914 = vpop.f32.mrf.mxu0
    %2915 = vdwg.mxu0
    %2916 = vmatprep.subr.bf16.mxu0 0
    %2917 = vmatpush1.bf16.msra.mxu0 %v2691
    %2918 = vmatprep.subr.bf16.mxu0 0
    %2919 = vmatpush1.bf16.msra.mxu0 %v2690
    %2920 = vmatprep.subr.bf16.mxu0 0
    %2921 = vmatpush1.bf16.msra.mxu0 %v2689
    %2922 = vmatprep.subr.bf16.mxu0 0
    %2923 = vmatpush1.bf16.msra.mxu0 %v2688
    %2924 = vmatprep.subr.bf16.mxu0 0
    %2925 = vmatpush1.bf16.msra.mxu0 %v2687
    %2926 = vmatprep.subr.bf16.mxu0 0
    %2927 = vmatpush1.bf16.msra.mxu0 %v2686
    %2928 = vmatprep.subr.bf16.mxu0 0
    %2929 = vmatpush1.bf16.msra.mxu0 %v2685
    %2930 = vmatprep.subr.bf16.mxu0 0
    %2931 = vmatpush1.bf16.msra.mxu0 %v2684
    %2932 = vmatprep.subr.bf16.mxu0 0
    %2933 = vmatpush2.bf16.msra.mxu0 %v2699
    %2934 = vmatprep.subr.bf16.mxu0 0
    %2935 = vmatpush2.bf16.msra.mxu0 %v2698
    %2936 = vmatprep.subr.bf16.mxu0 0
    %2937 = vmatpush2.bf16.msra.mxu0 %v2697
    %2938 = vmatprep.subr.bf16.mxu0 0
    %2939 = vmatpush2.bf16.msra.mxu0 %v2696
    %2940 = vmatprep.subr.bf16.mxu0 0
    %2941 = vmatpush2.bf16.msra.mxu0 %v2695
    %2942 = vmatprep.subr.bf16.mxu0 0
    %2943 = vmatpush2.bf16.msra.mxu0 %v2694
    %2944 = vmatprep.subr.bf16.mxu0 0
    %2945 = vmatpush2.bf16.msra.mxu0 %v2693
    %2946 = vmatprep.subr.bf16.mxu0 0
    %2947 = vmatpush2.bf16.msra.mxu0 %v2692
    %2948 = vmatprep.mubr.bf16.mxu0 %v2809
    %2949 = vmatmul.mubr.bf16.gmra.mxu0 %v2808
    %v2950 = vpop.f32.mrf.mxu0
    %v2951 = vadd.f32 %v2911, %v2950
    %v2952 = vpop.f32.mrf.mxu0
    %v2953 = vpop.f32.mrf.mxu0
    %v2954 = vpop.f32.mrf.mxu0
    %2955 = vdwg.mxu0
    %2956 = vmatprep.subr.bf16.mxu0 0
    %2957 = vmatpush1.bf16.msra.mxu0 %v2707
    %2958 = vmatprep.subr.bf16.mxu0 0
    %2959 = vmatpush1.bf16.msra.mxu0 %v2706
    %2960 = vmatprep.subr.bf16.mxu0 0
    %2961 = vmatpush1.bf16.msra.mxu0 %v2705
    %2962 = vmatprep.subr.bf16.mxu0 0
    %2963 = vmatpush1.bf16.msra.mxu0 %v2704
    %2964 = vmatprep.subr.bf16.mxu0 0
    %2965 = vmatpush1.bf16.msra.mxu0 %v2703
    %2966 = vmatprep.subr.bf16.mxu0 0
    %2967 = vmatpush1.bf16.msra.mxu0 %v2702
    %2968 = vmatprep.subr.bf16.mxu0 0
    %2969 = vmatpush1.bf16.msra.mxu0 %v2701
    %2970 = vmatprep.subr.bf16.mxu0 0
    %2971 = vmatpush1.bf16.msra.mxu0 %v2700
    %2972 = vmatprep.subr.bf16.mxu0 0
    %2973 = vmatpush2.bf16.msra.mxu0 %v2715
    %2974 = vmatprep.subr.bf16.mxu0 0
    %2975 = vmatpush2.bf16.msra.mxu0 %v2714
    %2976 = vmatprep.subr.bf16.mxu0 0
    %2977 = vmatpush2.bf16.msra.mxu0 %v2713
    %2978 = vmatprep.subr.bf16.mxu0 0
    %2979 = vmatpush2.bf16.msra.mxu0 %v2712
    %2980 = vmatprep.subr.bf16.mxu0 0
    %2981 = vmatpush2.bf16.msra.mxu0 %v2711
    %2982 = vmatprep.subr.bf16.mxu0 0
    %2983 = vmatpush2.bf16.msra.mxu0 %v2710
    %2984 = vmatprep.subr.bf16.mxu0 0
    %2985 = vmatpush2.bf16.msra.mxu0 %v2709
    %2986 = vmatprep.subr.bf16.mxu0 0
    %2987 = vmatpush2.bf16.msra.mxu0 %v2708
    %2988 = vmatprep.mubr.bf16.mxu0 %v2811
    %2989 = vmatmul.mubr.bf16.gmra.mxu0 %v2810
    %v2990 = vpop.f32.mrf.mxu0
    %v2991 = vadd.f32 %v2951, %v2990
    %v2992 = vpop.f32.mrf.mxu0
    %v2993 = vpop.f32.mrf.mxu0
    %v2994 = vpop.f32.mrf.mxu0
    %2995 = vdwg.mxu0
    %2996 = vmatprep.subr.bf16.mxu0 0
    %2997 = vmatpush1.bf16.msra.mxu0 %v2723
    %2998 = vmatprep.subr.bf16.mxu0 0
    %2999 = vmatpush1.bf16.msra.mxu0 %v2722
    %3000 = vmatprep.subr.bf16.mxu0 0
    %3001 = vmatpush1.bf16.msra.mxu0 %v2721
    %3002 = vmatprep.subr.bf16.mxu0 0
    %3003 = vmatpush1.bf16.msra.mxu0 %v2720
    %3004 = vmatprep.subr.bf16.mxu0 0
    %3005 = vmatpush1.bf16.msra.mxu0 %v2719
    %3006 = vmatprep.subr.bf16.mxu0 0
    %3007 = vmatpush1.bf16.msra.mxu0 %v2718
    %3008 = vmatprep.subr.bf16.mxu0 0
    %3009 = vmatpush1.bf16.msra.mxu0 %v2717
    %3010 = vmatprep.subr.bf16.mxu0 0
    %3011 = vmatpush1.bf16.msra.mxu0 %v2716
    %3012 = vmatprep.subr.bf16.mxu0 0
    %3013 = vmatpush2.bf16.msra.mxu0 %v2731
    %3014 = vmatprep.subr.bf16.mxu0 0
    %3015 = vmatpush2.bf16.msra.mxu0 %v2730
    %3016 = vmatprep.subr.bf16.mxu0 0
    %3017 = vmatpush2.bf16.msra.mxu0 %v2729
    %3018 = vmatprep.subr.bf16.mxu0 0
    %3019 = vmatpush2.bf16.msra.mxu0 %v2728
    %3020 = vmatprep.subr.bf16.mxu0 0
    %3021 = vmatpush2.bf16.msra.mxu0 %v2727
    %3022 = vmatprep.subr.bf16.mxu0 0
    %3023 = vmatpush2.bf16.msra.mxu0 %v2726
    %3024 = vmatprep.subr.bf16.mxu0 0
    %3025 = vmatpush2.bf16.msra.mxu0 %v2725
    %3026 = vmatprep.subr.bf16.mxu0 0
    %3027 = vmatpush2.bf16.msra.mxu0 %v2724
    %3028 = vmatprep.mubr.bf16.mxu0 %v2813
    %3029 = vmatmul.mubr.bf16.gmra.mxu0 %v2812
    %v3030 = vpop.f32.mrf.mxu0
    %v3031 = vadd.f32 %v2991, %v3030
    %v3032 = vpop.f32.mrf.mxu0
    %v3033 = vpop.f32.mrf.mxu0
    %v3034 = vpop.f32.mrf.mxu0
    %3035 = vdwg.mxu0
    %3036 = vmatprep.subr.bf16.mxu0 0
    %3037 = vmatpush1.bf16.msra.mxu0 %v2739
    %3038 = vmatprep.subr.bf16.mxu0 0
    %3039 = vmatpush1.bf16.msra.mxu0 %v2738
    %3040 = vmatprep.subr.bf16.mxu0 0
    %3041 = vmatpush1.bf16.msra.mxu0 %v2737
    %3042 = vmatprep.subr.bf16.mxu0 0
    %3043 = vmatpush1.bf16.msra.mxu0 %v2736
    %3044 = vmatprep.subr.bf16.mxu0 0
    %3045 = vmatpush1.bf16.msra.mxu0 %v2735
    %3046 = vmatprep.subr.bf16.mxu0 0
    %3047 = vmatpush1.bf16.msra.mxu0 %v2734
    %3048 = vmatprep.subr.bf16.mxu0 0
    %3049 = vmatpush1.bf16.msra.mxu0 %v2733
    %3050 = vmatprep.subr.bf16.mxu0 0
    %3051 = vmatpush1.bf16.msra.mxu0 %v2732
    %3052 = vmatprep.subr.bf16.mxu0 0
    %3053 = vmatpush2.bf16.msra.mxu0 %v2747
    %3054 = vmatprep.subr.bf16.mxu0 0
    %3055 = vmatpush2.bf16.msra.mxu0 %v2746
    %3056 = vmatprep.subr.bf16.mxu0 0
    %3057 = vmatpush2.bf16.msra.mxu0 %v2745
    %3058 = vmatprep.subr.bf16.mxu0 0
    %3059 = vmatpush2.bf16.msra.mxu0 %v2744
    %3060 = vmatprep.subr.bf16.mxu0 0
    %3061 = vmatpush2.bf16.msra.mxu0 %v2743
    %3062 = vmatprep.subr.bf16.mxu0 0
    %3063 = vmatpush2.bf16.msra.mxu0 %v2742
    %3064 = vmatprep.subr.bf16.mxu0 0
    %3065 = vmatpush2.bf16.msra.mxu0 %v2741
    %3066 = vmatprep.subr.bf16.mxu0 0
    %3067 = vmatpush2.bf16.msra.mxu0 %v2740
    %3068 = vmatprep.mubr.bf16.mxu0 %v2815
    %3069 = vmatmul.mubr.bf16.gmra.mxu0 %v2814
    %v3070 = vpop.f32.mrf.mxu0
    %v3071 = vadd.f32 %v3031, %v3070
    %v3072 = vpop.f32.mrf.mxu0
    %v3073 = vpop.f32.mrf.mxu0
    %v3074 = vpop.f32.mrf.mxu0
    %3075 = vdwg.mxu0
    %3076 = vmatprep.subr.bf16.mxu0 0
    %3077 = vmatpush1.bf16.msra.mxu0 %v2755
    %3078 = vmatprep.subr.bf16.mxu0 0
    %3079 = vmatpush1.bf16.msra.mxu0 %v2754
    %3080 = vmatprep.subr.bf16.mxu0 0
    %3081 = vmatpush1.bf16.msra.mxu0 %v2753
    %3082 = vmatprep.subr.bf16.mxu0 0
    %3083 = vmatpush1.bf16.msra.mxu0 %v2752
    %3084 = vmatprep.subr.bf16.mxu0 0
    %3085 = vmatpush1.bf16.msra.mxu0 %v2751
    %3086 = vmatprep.subr.bf16.mxu0 0
    %3087 = vmatpush1.bf16.msra.mxu0 %v2750
    %3088 = vmatprep.subr.bf16.mxu0 0
    %3089 = vmatpush1.bf16.msra.mxu0 %v2749
    %3090 = vmatprep.subr.bf16.mxu0 0
    %3091 = vmatpush1.bf16.msra.mxu0 %v2748
    %3092 = vmatprep.subr.bf16.mxu0 0
    %3093 = vmatpush2.bf16.msra.mxu0 %v2763
    %3094 = vmatprep.subr.bf16.mxu0 0
    %3095 = vmatpush2.bf16.msra.mxu0 %v2762
    %3096 = vmatprep.subr.bf16.mxu0 0
    %3097 = vmatpush2.bf16.msra.mxu0 %v2761
    %3098 = vmatprep.subr.bf16.mxu0 0
    %3099 = vmatpush2.bf16.msra.mxu0 %v2760
    %3100 = vmatprep.subr.bf16.mxu0 0
    %3101 = vmatpush2.bf16.msra.mxu0 %v2759
    %3102 = vmatprep.subr.bf16.mxu0 0
    %3103 = vmatpush2.bf16.msra.mxu0 %v2758
    %3104 = vmatprep.subr.bf16.mxu0 0
    %3105 = vmatpush2.bf16.msra.mxu0 %v2757
    %3106 = vmatprep.subr.bf16.mxu0 0
    %3107 = vmatpush2.bf16.msra.mxu0 %v2756
    %3108 = vmatprep.mubr.bf16.mxu0 %v2817
    %3109 = vmatmul.mubr.bf16.gmra.mxu0 %v2816
    %v3110 = vpop.f32.mrf.mxu0
    %v3111 = vadd.f32 %v3071, %v3110
    %v3112 = vpop.f32.mrf.mxu0
    %v3113 = vpop.f32.mrf.mxu0
    %v3114 = vpop.f32.mrf.mxu0
    %3115 = vdwg.mxu0
    %3116 = vmatprep.subr.bf16.mxu0 0
    %3117 = vmatpush1.bf16.msra.mxu0 %v2771
    %3118 = vmatprep.subr.bf16.mxu0 0
    %3119 = vmatpush1.bf16.msra.mxu0 %v2770
    %3120 = vmatprep.subr.bf16.mxu0 0
    %3121 = vmatpush1.bf16.msra.mxu0 %v2769
    %3122 = vmatprep.subr.bf16.mxu0 0
    %3123 = vmatpush1.bf16.msra.mxu0 %v2768
    %3124 = vmatprep.subr.bf16.mxu0 0
    %3125 = vmatpush1.bf16.msra.mxu0 %v2767
    %3126 = vmatprep.subr.bf16.mxu0 0
    %3127 = vmatpush1.bf16.msra.mxu0 %v2766
    %3128 = vmatprep.subr.bf16.mxu0 0
    %3129 = vmatpush1.bf16.msra.mxu0 %v2765
    %3130 = vmatprep.subr.bf16.mxu0 0
    %3131 = vmatpush1.bf16.msra.mxu0 %v2764
    %3132 = vmatprep.subr.bf16.mxu0 0
    %3133 = vmatpush2.bf16.msra.mxu0 %v2779
    %3134 = vmatprep.subr.bf16.mxu0 0
    %3135 = vmatpush2.bf16.msra.mxu0 %v2778
    %3136 = vmatprep.subr.bf16.mxu0 0
    %3137 = vmatpush2.bf16.msra.mxu0 %v2777
    %3138 = vmatprep.subr.bf16.mxu0 0
    %3139 = vmatpush2.bf16.msra.mxu0 %v2776
    %3140 = vmatprep.subr.bf16.mxu0 0
    %3141 = vmatpush2.bf16.msra.mxu0 %v2775
    %3142 = vmatprep.subr.bf16.mxu0 0
    %3143 = vmatpush2.bf16.msra.mxu0 %v2774
    %3144 = vmatprep.subr.bf16.mxu0 0
    %3145 = vmatpush2.bf16.msra.mxu0 %v2773
    %3146 = vmatprep.subr.bf16.mxu0 0
    %3147 = vmatpush2.bf16.msra.mxu0 %v2772
    %3148 = vmatprep.mubr.bf16.mxu0 %v2819
    %3149 = vmatmul.mubr.bf16.gmra.mxu0 %v2818
    %v3150 = vpop.f32.mrf.mxu0
    %v3151 = vadd.f32 %v3111, %v3150
    %v3152 = vpop.f32.mrf.mxu0
    %v3153 = vpop.f32.mrf.mxu0
    %v3154 = vpop.f32.mrf.mxu0
    %3155 = vdwg.mxu0
    %v3156 = vmul.f32 %v3151, 0.00390625
    %3157 = vst [vmem:[#allocation2] sm:$0xff] %v3156
    // Predicated region
    $region18: #{tpu_custom_call.1} parent=1 // pred_check
      _
    $region19: #{tpu_custom_call.1} parent=1 // pred_check_branch
      %3159 = sbr.rel (0) target = $region21
    $region20: #{tpu_custom_call.1} parent=1 // pred_region
      %s3161 = ssub.s32 128, 128
      %3162 = vsyncadd [#allocation3], %s3161
      %s3164 = sshll.u32 [#allocation2], 4
      %s3165 = int_to_ptr.vmem [resolvable:$true] %s3164
      %3167 = dma.vmem_to_hbm [thread:$0]  %s3165, 128, %s4, [#allocation3]
    $region21: #{tpu_custom_call.1} parent=1 // pred_fallthru
      _
    // Predicated region
    $region22: #{tpu_custom_call.1} parent=1 // pred_check
      _
    $region23: #{tpu_custom_call.1} parent=1 // pred_check_branch
      %3169 = sbr.rel (0) target = $region25
    $region24: #{tpu_custom_call.1} parent=1 // pred_region
      %3170 = dma.done [#allocation3], 128
    $region25: #{tpu_custom_call.1} parent=1 // pred_fallthru
      _
    %3171 = vsyncpa [#allocation3], 1

</llo_original>
